<compile_context>
chip_gen: v7x
topology: tpu7x:2x2x1
jax: 0.10.0
libtpu: 0.0.40
codegen_flags: <defaults>
</compile_context>

<pallas_src>
import functools

import jax
import jax.numpy as jnp
from jax import lax
from jax.experimental import pallas as pl
from jax.experimental.pallas import tpu as pltpu

# --- ShareWeightNetworkWrapper.__init__ defaults -----------------------------------
START_EPOCH = 10
START_MODULE = 3 + 1
NUM_POINTS = 128            # num_points
NUM_POINTS_FFT = 32         # unused in forward, kept for fidelity
RO = 4.0                    # unused in forward, kept for fidelity
STRIDE = 10.0               # unused in forward, kept for fidelity

N_PRED = 7                  # number of contour refinement stages produced by the stub net
INTERP_T = 10               # gt contour interpolation factor used by the DM loss

_LANES = 128


def _lane_iota():
    return lax.broadcasted_iota(jnp.int32, (1, _LANES), 1)


# ====================================================================================
# Kernel 1: fused 1x1-conv heads (ct + bd) + both focal losses
# ====================================================================================
def _make_heads_focal_kernel(n_classes):
    # CenterNet penalty-reduced focal loss (alpha=2, beta=4); sigmoid applied in-kernel.
    # TODO(synk): FocalLoss source not provided in the module; standard definition used.
    def kernel(x_ref, wT_ref, bias_ref, ctgt_ref, bdgt_ref,
               logit_ref, loss_ref, acc_ref):
        b = pl.program_id(0)
        nb = pl.num_programs(0)
        lane = _lane_iota()

        # 1x1 conv heads as one (Cpad, Cin) @ (Cin, H*W) bf16 MXU matmul, f32 accumulate.
        logits = jnp.dot(wT_ref[...], x_ref[0],
                         preferred_element_type=jnp.float32) + bias_ref[...]
        logit_ref[0] = logits

        # --- ct head: focal loss on the clamped sigmoid (e2ec `sigmoid` util clamps) ---
        ct_l = logits[:n_classes, :]
        ct_g = ctgt_ref[0]
        p = jnp.clip(jax.nn.sigmoid(ct_l), 1e-4, 1.0 - 1e-4)
        ct_pos = (ct_g == 1.0).astype(jnp.float32)
        ct_neg = (ct_g < 1.0).astype(jnp.float32)
        ct_pos_l = jnp.log(p) * jnp.square(1.0 - p) * ct_pos
        ct_neg_l = jnp.log(1.0 - p) * jnp.square(p) * ((1.0 - ct_g) ** 4) * ct_neg

        # --- bd head: focal loss on torch.sigmoid (no clamp); stable log-sigmoid so
        #     saturated logits cannot produce -inf/NaN. ---
        bd_l = logits[n_classes:n_classes + 1, :]
        bd_g = bdgt_ref[0]
        q = jax.nn.sigmoid(bd_l)
        log1p_enx = jnp.log(1.0 + jnp.exp(-jnp.abs(bd_l)))
        log_q = jnp.minimum(bd_l, 0.0) - log1p_enx      # log(sigmoid(x))
        log_1mq = jnp.minimum(-bd_l, 0.0) - log1p_enx   # log(1 - sigmoid(x))
        bd_pos = (bd_g == 1.0).astype(jnp.float32)
        bd_neg = (bd_g < 1.0).astype(jnp.float32)
        bd_pos_l = log_q * jnp.square(1.0 - q) * bd_pos
        bd_neg_l = log_1mq * jnp.square(q) * ((1.0 - bd_g) ** 4) * bd_neg

        @pl.when(b == 0)
        def _():
            acc_ref[...] = jnp.zeros_like(acc_ref)
            loss_ref[...] = jnp.zeros_like(loss_ref)

        def mask(k):
            return (lane == k).astype(jnp.float32)

        # accumulate six scalar partials into distinct lanes of the VMEM accumulator
        contrib = (mask(0) * jnp.sum(ct_pos_l) + mask(1) * jnp.sum(ct_neg_l)
                   + mask(2) * jnp.sum(ct_pos)
                   + mask(3) * jnp.sum(bd_pos_l) + mask(4) * jnp.sum(bd_neg_l)
                   + mask(5) * jnp.sum(bd_pos))
        acc_ref[...] = acc_ref[...] + contrib

        @pl.when(b == nb - 1)
        def _():
            a = acc_ref[...]

            def pick(k):
                return jnp.sum(a * mask(k))

            ct_loss = jnp.where(pick(2) == 0.0, -pick(1),
                                -(pick(0) + pick(1)) / jnp.maximum(pick(2), 1.0))
            bd_loss = jnp.where(pick(5) == 0.0, -pick(4),
                                -(pick(3) + pick(4)) / jnp.maximum(pick(5), 1.0))
            loss_ref[...] = mask(0) * ct_loss + mask(1) * bd_loss

    return kernel


@functools.lru_cache(maxsize=None)
def _build_heads_focal(batch_size, cin, n_classes, cp, s):
    return pl.pallas_call(
        _make_heads_focal_kernel(n_classes),
        out_shape=(jax.ShapeDtypeStruct((batch_size, cp, s), jnp.float32),
                   jax.ShapeDtypeStruct((1, _LANES), jnp.float32)),
        grid=(batch_size,),
        in_specs=[pl.BlockSpec((1, cin, s), lambda b: (b, 0, 0)),
                  pl.BlockSpec((cp, cin), lambda b: (0, 0)),
                  pl.BlockSpec((cp, 1), lambda b: (0, 0)),
                  pl.BlockSpec((1, n_classes, s), lambda b: (b, 0, 0)),
                  pl.BlockSpec((1, 1, s), lambda b: (b, 0, 0))],
        out_specs=(pl.BlockSpec((1, cp, s), lambda b: (b, 0, 0)),
                   pl.BlockSpec((1, _LANES), lambda b: (0, 0))),
        scratch_shapes=[pltpu.VMEM((1, _LANES), jnp.float32)],
        # batch axis carries the loss accumulator -> must be sequential
        compiler_params=pltpu.CompilerParams(dimension_semantics=("arbitrary",)),
    )


def heads_and_focal(inp_nchw, w_ct, b_ct, w_bd, b_bd, ct_gt, bd_gt):
    """Fused ct/bd 1x1-conv heads + both focal losses; NCHW preserved (no transposes)."""
    bsz, cin, h, w = inp_nchw.shape
    s = h * w
    nc = w_ct.shape[1]
    cp = max(8, ((nc + 1 + 7) // 8) * 8)          # pad head count to a sublane multiple

    w_heads = jnp.concatenate([w_ct, w_bd], axis=1)                 # (cin, nc+1)
    w_heads = jnp.pad(w_heads, ((0, 0), (0, cp - (nc + 1))))
    wT = jnp.transpose(w_heads).astype(jnp.bfloat16)                # (cp, cin)
    bias = jnp.concatenate([b_ct, b_bd], axis=1)
    bias = jnp.transpose(jnp.pad(bias, ((0, 0), (0, cp - (nc + 1)))))  # (cp, 1)

    x = inp_nchw.reshape(bsz, cin, s).astype(jnp.bfloat16)
    ctg = ct_gt.reshape(bsz, nc, s).astype(jnp.float32)
    bdg = bd_gt.reshape(bsz, 1, s).astype(jnp.float32)

    logits, losses = _build_heads_focal(bsz, cin, nc, cp, s)(
        x, wT, bias.astype(jnp.float32), ctg, bdg)
    ct_hm = logits[:, :nc, :].reshape(bsz, nc, h, w)
    bd = logits[:, nc:nc + 1, :].reshape(bsz, 1, h, w)
    return ct_hm, bd, losses[0, 0], losses[0, 1]


# ====================================================================================
# Kernel 2: fused contour-head matmul (all stages in one MXU pass)
# ====================================================================================
def _mm_bias_kernel(a_ref, b_ref, c_ref, o_ref):
    o_ref[...] = jnp.dot(a_ref[...], b_ref[...],
                         preferred_element_type=jnp.float32) + c_ref[...]


@functools.lru_cache(maxsize=None)
def _build_mm(m, k, n):
    return pl.pallas_call(
        _mm_bias_kernel,
        out_shape=jax.ShapeDtypeStruct((m, n), jnp.float32),
        grid=(1,),
        in_specs=[pl.BlockSpec((m, k), lambda i: (0, 0)),
                  pl.BlockSpec((k, n), lambda i: (0, 0)),
                  pl.BlockSpec((1, n), lambda i: (0, 0))],
        out_specs=pl.BlockSpec((m, n), lambda i: (0, 0)),
        compiler_params=pltpu.CompilerParams(dimension_semantics=("arbitrary",)),
    )


def mm_bias(a, b, bias):
    """(M,K)@(K,N)+bias — bf16 MXU operands, f32 accumulate/out."""
    return _build_mm(a.shape[0], a.shape[1], b.shape[1])(
        a.astype(jnp.bfloat16), b.astype(jnp.bfloat16), bias.astype(jnp.float32))


# ====================================================================================
# Kernel 3: batched smooth-L1 reductions (init_py + per-stage shape + per-stage py)
# ====================================================================================
def _make_poly_losses_kernel(n_stages):
    # ShapeLoss: smooth_l1( roll(pred, -1, points) - pred , target_shape )
    # TODO(synk): ShapeLoss source not provided; e2ec-style first-difference loss used.
    def kernel(preds_ref, gt_ref, init_ref, o_ref):
        lane = _lane_iota()

        def mask(k):
            return (lane == k).astype(jnp.float32)

        def roll_l2(x):   # circular shift left by one contour point on (N, 2P)
            return jnp.concatenate([x[:, 2:], x[:, :2]], axis=1)

        def sl1sum(a, b):   # beta = 1.0 smooth-L1, SUM (mean divisor applied host-side)
            d = a - b
            ad = jnp.abs(d)
            return jnp.sum(jnp.where(ad < 1.0, 0.5 * d * d, ad - 0.5))

        gt = gt_ref[...]
        tar_shape = roll_l2(gt) - gt
        out = mask(0) * sl1sum(init_ref[...], gt)
        for i in range(n_stages):
            p = preds_ref[i]
            out = out + mask(1 + i) * sl1sum(roll_l2(p) - p, tar_shape)
            out = out + mask(1 + n_stages + i) * sl1sum(p, gt)
        o_ref[...] = out

    return kernel


@functools.lru_cache(maxsize=None)
def _build_poly_losses(n_stages, n_polys, two_p):
    return pl.pallas_call(
        _make_poly_losses_kernel(n_stages),
        out_shape=jax.ShapeDtypeStruct((1, _LANES), jnp.float32),
        grid=(1,),
        in_specs=[pl.BlockSpec((n_stages, n_polys, two_p), lambda i: (0, 0, 0)),
                  pl.BlockSpec((n_polys, two_p), lambda i: (0, 0)),
                  pl.BlockSpec((n_polys, two_p), lambda i: (0, 0))],
        out_specs=pl.BlockSpec((1, _LANES), lambda i: (0, 0)),
        compiler_params=pltpu.CompilerParams(dimension_semantics=("arbitrary",)),
    )


# ====================================================================================
# Kernel 4: DM loss on a (stage, poly) grid — MXU cross term, lane-dense gt contour
# ====================================================================================
def _dm_kernel(prev_ref, pred_ref, gti_ref, w_ref, o_ref):
    n = pl.program_id(1)

    @pl.when(n == 0)
    def _():
        o_ref[...] = jnp.zeros_like(o_ref)

    prev = prev_ref[0, 0]          # (P, 2) previous-stage prediction (drives matching)
    pred = pred_ref[0, 0]          # (P, 2) prediction the loss is applied to
    gti = gti_ref[0]               # (2, P*T) interpolated gt contour (x row, y row)
    w = w_ref[0]                   # (P, 1) gaussian-smoothed key-point weights

    gx = gti[0:1, :]
    gy = gti[1:2, :]
    gsq = gx * gx + gy * gy                                          # (1, P*T)
    # nearest-point score: |g|^2 - 2 p.g  (the per-point |p|^2 constant does not
    # change the argmin, so it is dropped); cross term on the MXU.
    cross = jnp.dot(prev, gti, preferred_element_type=jnp.float32)   # (P, P*T)
    score = gsq - 2.0 * cross
    mins = jnp.min(score, axis=1, keepdims=True)
    sel = (score <= mins).astype(jnp.float32)
    cnt = jnp.maximum(jnp.sum(sel, axis=1, keepdims=True), 1.0)
    tx = jnp.sum(sel * gx, axis=1, keepdims=True) / cnt              # matched gt x
    ty = jnp.sum(sel * gy, axis=1, keepdims=True) / cnt              # matched gt y

    dx = pred[:, 0:1] - tx
    dy = pred[:, 1:2] - ty
    lx = jnp.where(jnp.abs(dx) < 1.0, 0.5 * dx * dx, jnp.abs(dx) - 0.5)
    ly = jnp.where(jnp.abs(dy) < 1.0, 0.5 * dy * dy, jnp.abs(dy) - 0.5)
    poly_sum = jnp.sum((lx + ly) * w)
    # broadcast-add the scalar into the whole resident per-stage tile
    o_ref[...] = o_ref[...] + poly_sum


@functools.lru_cache(maxsize=None)
def _build_dm(n_stages, n_polys, p, pt):
    return pl.pallas_call(
        _dm_kernel,
        out_shape=jax.ShapeDtypeStruct((n_stages, 8, _LANES), jnp.float32),
        grid=(n_stages, n_polys),
        in_specs=[pl.BlockSpec((1, 1, p, 2), lambda s, n: (s, n, 0, 0)),
                  pl.BlockSpec((1, 1, p, 2), lambda s, n: (s, n, 0, 0)),
                  pl.BlockSpec((1, 2, pt), lambda s, n: (n, 0, 0)),
                  pl.BlockSpec((1, p, 1), lambda s, n: (n, 0, 0))],
        out_specs=pl.BlockSpec((1, 8, _LANES), lambda s, n: (s, 0, 0)),
        compiler_params=pltpu.CompilerParams(
            dimension_semantics=("parallel", "arbitrary")),
    )


def dm_losses(prev_stack, pred_stack, gt_poly, key_mask):
    # TODO(synk): DMLoss (e2ec dynamic-matching loss) source not provided; implemented as:
    # match each point to its nearest point on the 10x linearly-interpolated gt contour
    # (matching driven by the previous-stage prediction) and apply a key-point-weighted
    # (gaussian kernel_size=7, sigma=0.6) smooth-L1 between prediction and matched targets.
    n_stages, n, p, _ = pred_stack.shape
    t = INTERP_T
    # dense gt contour (glue; order of the dense points is irrelevant to the matching)
    gt_prev = jnp.concatenate([gt_poly[:, -1:], gt_poly[:, :-1]], axis=1)
    step = (jnp.arange(t, dtype=jnp.float32) / t)[None, None, :, None]
    interp = gt_poly[:, :, None, :] * step + gt_prev[:, :, None, :] * (1.0 - step)
    gti = jnp.transpose(interp.reshape(n, p * t, 2), (0, 2, 1))      # (N, 2, P*T)
    # gaussian-smoothed key-point weights (glue; kernel_size=7, sigma=0.6)
    ksz, sigma, half = 7, 0.6, 3
    xs = jnp.arange(ksz, dtype=jnp.float32) - half
    gauss = jnp.exp(-(xs ** 2) / (2.0 * sigma ** 2))
    gauss = gauss / jnp.sum(gauss)
    km_pad = jnp.pad(key_mask.astype(jnp.float32), ((0, 0), (half, half)))
    smoothed = sum(gauss[j] * km_pad[:, j:j + p] for j in range(ksz))
    weight = (1.0 + smoothed).reshape(n, p, 1)

    out = _build_dm(n_stages, n, p, p * t)(
        prev_stack.astype(jnp.float32), pred_stack.astype(jnp.float32),
        gti.astype(jnp.float32), weight.astype(jnp.float32))
    nums = out[:, 0, 0]                       # per-stage weighted smooth-L1 numerators
    return nums, 2.0 * jnp.sum(weight)


# ====================================================================================
# Synthetic `net` (the wrapped network is external in the PyTorch module)
# ====================================================================================
def init_net_params(key, cin, n_classes, feat_dim, num_points, n_pred):
    ks = jax.random.split(key, 3 + n_pred)
    s = 0.1
    return {
        'w_ct': s * jax.random.normal(ks[0], (cin, n_classes), jnp.float32),
        'b_ct': jnp.zeros((1, n_classes), jnp.float32),
        'w_bd': s * jax.random.normal(ks[1], (cin, 1), jnp.float32),
        'b_bd': jnp.zeros((1, 1), jnp.float32),
        'w_init': s * jax.random.normal(ks[2], (feat_dim, 2 * num_points), jnp.float32),
        'b_init': jnp.zeros((1, 2 * num_points), jnp.float32),
        'w_stage': [s * jax.random.normal(ks[3 + i], (feat_dim, 2 * num_points), jnp.float32)
                    for i in range(n_pred)],
        'b_stage': [jnp.zeros((1, 2 * num_points), jnp.float32) for _ in range(n_pred)],
    }


def synthetic_net(params, inp, batch, ct_gt=None, bd_gt=None):
    # TODO(synk): the real `net` (E2EC contour network) is an external module; a small
    # deterministic Pallas-backed stand-in (fused 1x1-conv heads + fused linear contour
    # heads) is used so the wrapper's loss pipeline can be exercised end to end.
    bsz, cin, h, w = inp.shape
    nc = params['w_ct'].shape[1]
    if ct_gt is None:          # test path: focal-loss outputs of the fused kernel unused
        ct_gt = jnp.zeros((bsz, nc, h, w), jnp.float32)
    if bd_gt is None:
        bd_gt = jnp.zeros((bsz, 1, h, w), jnp.float32)
    ct_hm, bd, ct_loss, bd_loss = heads_and_focal(
        inp, params['w_ct'], params['b_ct'], params['w_bd'], params['b_bd'],
        ct_gt, bd_gt)

    feat = batch['poly_feat']                               # (N, D) per-polygon features
    gt = batch['img_gt_polys']
    n = feat.shape[0]
    p = NUM_POINTS
    n_pred = len(params['w_stage'])

    # all contour heads (init + n_pred stages) as ONE lane-dense bf16 MXU matmul
    w_all = jnp.concatenate([params['w_init']] + params['w_stage'], axis=1)
    b_all = jnp.concatenate([params['b_init']] + params['b_stage'], axis=1)
    offs = mm_bias(feat, w_all, b_all).reshape(n, 1 + n_pred, 2 * p)
    poly_init = gt + 0.5 * offs[:, 0].reshape(n, p, 2)
    cum = jnp.cumsum(offs[:, 1:], axis=1)                   # cumulative stage refinements
    py_pred = [poly_init + 0.1 * cum[:, i].reshape(n, p, 2) for i in range(n_pred)]

    output = {'ct_hm': ct_hm, 'bd': bd, 'poly_init': poly_init,
              'py_pred': py_pred, 'img_gt_polys': gt}
    return output, ct_loss, bd_loss


# ====================================================================================
# ShareWeightNetworkWrapper.forward
# ====================================================================================
def forward(params, batch):
    if 'test' in batch['meta']:
        output, _, _ = synthetic_net(params, batch['inp'], batch)
        return output

    epoch = batch['epoch']
    output, ct_loss, bd_loss = synthetic_net(
        params, batch['inp'], batch, ct_gt=batch['ct_hm'], bd_gt=batch['bd_map'])

    scalar_stats = {}
    loss = 0.0

    # torch: batch['keypoints_mask'][batch['ct_01']] — boolean indexing with a
    # data-dependent shape; ct_01 is all-True in this synthetic setup so it is an
    # exact reshape to (num_polys, num_points).
    keyPointsMask = batch['keypoints_mask'].reshape(-1, NUM_POINTS)

    scalar_stats.update({'ct_loss': ct_loss})
    loss = loss + ct_loss * 1.0

    keyPointsMask = batch['keypoints_mask'].reshape(-1, NUM_POINTS)

    gt = output['img_gt_polys']
    n_pred = len(output['py_pred'])
    num_polys = output['poly_init'].shape[0]

    # One fused reduction kernel: init_py sum + per-stage shape sums + per-stage py sums.
    if num_polys == 0:
        init_py_loss = jnp.sum(output['poly_init']) * 0.0
        shape_sums = [jnp.float32(0.0)] * n_pred
        py_sums = [jnp.float32(0.0)] * n_pred
    else:
        preds = jnp.stack([pp.reshape(num_polys, -1) for pp in output['py_pred']], axis=0)
        sums = _build_poly_losses(n_pred, num_polys, preds.shape[-1])(
            preds.astype(jnp.float32),
            gt.reshape(num_polys, -1).astype(jnp.float32),
            output['poly_init'].reshape(num_polys, -1).astype(jnp.float32))
        count = float(num_polys * NUM_POINTS * 2)             # smooth_l1 'mean' divisor
        init_py_loss = sums[0, 0] / count
        shape_sums = [sums[0, 1 + i] / count for i in range(n_pred)]
        py_sums = [sums[0, 1 + n_pred + i] / count for i in range(n_pred)]
    scalar_stats.update({'init_py_loss': init_py_loss})
    loss = loss + init_py_loss * 0.1

    if 'bd' in output:
        scalar_stats.update({'bd_loss': bd_loss})
        loss = loss + bd_loss

    py_loss = 0.0
    shape_loss_v = 0.0
    dm_loss_v = 0.0

    dm_stage_ids = [i for i in range(n_pred)
                    if (epoch + 1 > START_EPOCH) and (i > START_MODULE)]
    if dm_stage_ids and num_polys > 0:
        prev_stack = jnp.stack([output['py_pred'][i - 1] for i in dm_stage_ids], axis=0)
        pred_stack = jnp.stack([output['py_pred'][i] for i in dm_stage_ids], axis=0)
        dm_nums, dm_denom = dm_losses(prev_stack, pred_stack, gt, keyPointsMask)

    dm_k = 0
    for i in range(n_pred):
        i_weight = 0.8 ** (n_pred - i - 1)
        shape_loss_v = shape_loss_v + i_weight * shape_sums[i]
        if epoch + 1 > START_EPOCH:
            if i > START_MODULE:
                if num_polys > 0:
                    dm_loss_v = dm_loss_v + i_weight * dm_nums[dm_k] / dm_denom
                dm_k += 1
            else:
                py_loss = py_loss + i_weight * py_sums[i]
        else:
            py_loss = py_loss + i_weight * py_sums[i]

    if epoch + 1 > START_EPOCH:
        n_pred_for_py = START_MODULE + 1
        py_loss = py_loss / n_pred_for_py
        dm_loss_v = dm_loss_v / (n_pred - n_pred_for_py)
    else:
        py_loss = py_loss / n_pred
    shape_loss_v = shape_loss_v / n_pred

    scalar_stats.update({'py_loss': py_loss})
    scalar_stats.update({'shape_loss': shape_loss_v})
    scalar_stats.update({'dm_loss': dm_loss_v})
    loss = loss + py_loss
    loss = loss + shape_loss_v
    loss = loss + dm_loss_v
    scalar_stats.update({'loss': loss})
    return output, loss, scalar_stats


# ====================================================================================
if __name__ == "__main__":
    key = jax.random.PRNGKey(0)
    ks = jax.random.split(key, 10)

    B, CIN, H, W = 2, 4, 16, 16
    N_CLASSES = 4
    MAX_OBJS = 4
    N_POLY = B * MAX_OBJS            # 8 polygons
    P = NUM_POINTS                   # 128 contour points per polygon
    D = 32                           # per-polygon feature dim

    inp = jax.random.normal(ks[0], (B, CIN, H, W), jnp.float32)

    ct_hm_gt = jax.random.uniform(ks[1], (B, N_CLASSES, H, W), jnp.float32) ** 4
    ct_hm_gt = ct_hm_gt.at[:, :, ::8, ::8].set(1.0)
    bd_gt = jax.random.uniform(ks[2], (B, 1, H, W), jnp.float32) ** 4
    bd_gt = bd_gt.at[:, :, ::8, ::8].set(1.0)

    keypoints_mask = (jax.random.uniform(ks[3], (B, MAX_OBJS, P)) < 0.25).astype(jnp.float32)
    ct_01 = jnp.ones((B, MAX_OBJS), dtype=bool)

    theta = jnp.linspace(0.0, 2.0 * jnp.pi, P, endpoint=False)
    circ = jnp.stack([jnp.cos(theta), jnp.sin(theta)], axis=-1)[None]        # (1, P, 2)
    centers = jax.random.uniform(ks[4], (N_POLY, 1, 2), minval=5.0, maxval=11.0)
    radii = jax.random.uniform(ks[5], (N_POLY, 1, 1), minval=2.0, maxval=5.0)
    img_gt_polys = centers + radii * circ + 0.1 * jax.random.normal(ks[6], (N_POLY, P, 2))

    poly_feat = jax.random.normal(ks[7], (N_POLY, D), jnp.float32)

    batch = {
        'inp': inp,
        'ct_hm': ct_hm_gt,
        'bd_map': bd_gt,
        'keypoints_mask': keypoints_mask,
        'ct_01': ct_01,
        'img_gt_polys': img_gt_polys.astype(jnp.float32),
        'poly_feat': poly_feat,
        'epoch': 12,                 # epoch + 1 > start_epoch -> DM-loss branch exercised
        'meta': {},                  # no 'test' key -> training path
    }

    params = init_net_params(ks[8], CIN, N_CLASSES, D, P, N_PRED)

    output, loss, scalar_stats = forward(params, batch)
    loss = jax.block_until_ready(loss)
    jax.block_until_ready(scalar_stats['dm_loss'])
    assert bool(jnp.isfinite(loss)), "loss is not finite"
    print("KERNEL_OK")
</pallas_src>

<mosaic_0001>
module attributes {stable_mosaic.version = 11 : i64} {
  func.func @kernel(%arg0: i32, %arg1: memref<1x4x256xbf16, #tpu.memory_space<vmem>>, %arg2: memref<8x4xbf16, #tpu.memory_space<vmem>>, %arg3: memref<8x1xf32, #tpu.memory_space<vmem>>, %arg4: memref<1x4x256xf32, #tpu.memory_space<vmem>>, %arg5: memref<1x1x256xf32, #tpu.memory_space<vmem>>, %arg6: memref<1x8x256xf32, #tpu.memory_space<vmem>>, %arg7: memref<1x128xf32, #tpu.memory_space<vmem>>, %arg8: memref<1x128xf32, #tpu.memory_space<vmem>>) attributes {dimension_semantics = [#tpu.dimension_semantics<arbitrary>], iteration_bounds = array<i64: 2>, scalar_prefetch = 0 : i64, scratch_operands = 1 : i64, tpu.core_type = #tpu.core_type<tc>, window_params = [{transform_indices = @transform_0, window_bounds = array<i64: 1, 4, 256>}, {pipeline_mode = #tpu.pipeline_mode<synchronous>, transform_indices = @transform_1, window_bounds = array<i64: 8, 4>}, {pipeline_mode = #tpu.pipeline_mode<synchronous>, transform_indices = @transform_2, window_bounds = array<i64: 8, 1>}, {transform_indices = @transform_3, window_bounds = array<i64: 1, 4, 256>}, {transform_indices = @transform_4, window_bounds = array<i64: 1, 1, 256>}, {transform_indices = @transform_5, window_bounds = array<i64: 1, 8, 256>}, {pipeline_mode = #tpu.pipeline_mode<synchronous>, transform_indices = @transform_6, window_bounds = array<i64: 1, 128>}]} {
    %0 = tpu.iota {dimensions = array<i32: 1>} : vector<1x128xi32>
    %c0 = arith.constant 0 : index
    %c0_0 = arith.constant 0 : index
    %1 = vector.load %arg2[%c0, %c0_0] : memref<8x4xbf16, #tpu.memory_space<vmem>>, vector<8x4xbf16>
    %c0_1 = arith.constant 0 : index
    %c0_2 = arith.constant 0 : index
    %c0_3 = arith.constant 0 : index
    %2 = vector.load %arg1[%c0_1, %c0_2, %c0_3] : memref<1x4x256xbf16, #tpu.memory_space<vmem>>, vector<1x4x256xbf16>
    %3 = vector.shape_cast %2 : vector<1x4x256xbf16> to vector<4x256xbf16>
    %cst = arith.constant dense<0.000000e+00> : vector<8x256xf32>
    %4 = tpu.matmul %1, %3, %cst {dimension_numbers = #tpu.dot_dimension_numbers<[1], [0], [0], [1], [0, 0, 1, 1], [], []>} : vector<8x4xbf16>, vector<4x256xbf16>, vector<8x256xf32> -> vector<8x256xf32>
    %c0_4 = arith.constant 0 : index
    %c0_5 = arith.constant 0 : index
    %5 = vector.load %arg3[%c0_4, %c0_5] : memref<8x1xf32, #tpu.memory_space<vmem>>, vector<8x1xf32>
    %6 = vector.broadcast %5 : vector<8x1xf32> to vector<8x256xf32>
    %7 = arith.addf %4, %6 : vector<8x256xf32>
    %c0_6 = arith.constant 0 : index
    %c0_7 = arith.constant 0 : index
    %c0_8 = arith.constant 0 : index
    %8 = vector.load %arg6[%c0_6, %c0_7, %c0_8] : memref<1x8x256xf32, #tpu.memory_space<vmem>>, vector<1x8x256xf32>
    %9 = vector.shape_cast %8 : vector<1x8x256xf32> to vector<8x256xf32>
    %10 = vector.shape_cast %7 : vector<8x256xf32> to vector<1x8x256xf32>
    tpu.vector_store %arg6[%c0_6, %c0_7, %c0_8], %10 {strides = array<i32>} : memref<1x8x256xf32, #tpu.memory_space<vmem>>, vector<1x8x256xf32>,
    %11 = vector.extract_strided_slice %7 {offsets = [0, 0], sizes = [4, 256], strides = [1, 1]} : vector<8x256xf32> to vector<4x256xf32>
    %c0_9 = arith.constant 0 : index
    %c0_10 = arith.constant 0 : index
    %c0_11 = arith.constant 0 : index
    %12 = vector.load %arg4[%c0_9, %c0_10, %c0_11] : memref<1x4x256xf32, #tpu.memory_space<vmem>>, vector<1x4x256xf32>
    %13 = vector.shape_cast %12 : vector<1x4x256xf32> to vector<4x256xf32>
    %14 = arith.negf %11 : vector<4x256xf32>
    %15 = math.exp %14 : vector<4x256xf32>
    %cst_12 = arith.constant 1.000000e+00 : f32
    %16 = vector.broadcast %cst_12 : f32 to vector<4x256xf32>
    %17 = arith.addf %16, %15 : vector<4x256xf32>
    %18 = arith.divf %16, %17 : vector<4x256xf32>
    %cst_13 = arith.constant 9.99999974E-5 : f32
    %cst_14 = arith.constant 0.999899983 : f32
    %19 = vector.broadcast %cst_13 : f32 to vector<4x256xf32>
    %20 = arith.maximumf %19, %18 : vector<4x256xf32>
    %21 = vector.broadcast %cst_14 : f32 to vector<4x256xf32>
    %22 = arith.minimumf %21, %20 : vector<4x256xf32>
    %cst_15 = arith.constant 1.000000e+00 : f32
    %23 = vector.broadcast %cst_15 : f32 to vector<4x256xf32>
    %24 = arith.cmpf oeq, %13, %23 : vector<4x256xf32>
    %25 = arith.extui %24 : vector<4x256xi1> to vector<4x256xi32>
    %26 = arith.sitofp %25 : vector<4x256xi32> to vector<4x256xf32>
    %cst_16 = arith.constant 1.000000e+00 : f32
    %27 = vector.broadcast %cst_16 : f32 to vector<4x256xf32>
    %28 = arith.cmpf olt, %13, %27 : vector<4x256xf32>
    %29 = arith.extui %28 : vector<4x256xi1> to vector<4x256xi32>
    %30 = arith.sitofp %29 : vector<4x256xi32> to vector<4x256xf32>
    %31 = math.log %22 : vector<4x256xf32>
    %cst_17 = arith.constant 1.000000e+00 : f32
    %32 = vector.broadcast %cst_17 : f32 to vector<4x256xf32>
    %33 = arith.subf %32, %22 : vector<4x256xf32>
    %34 = arith.mulf %33, %33 : vector<4x256xf32>
    %35 = arith.mulf %31, %34 : vector<4x256xf32>
    %36 = arith.mulf %35, %26 : vector<4x256xf32>
    %cst_18 = arith.constant 1.000000e+00 : f32
    %37 = vector.broadcast %cst_18 : f32 to vector<4x256xf32>
    %38 = arith.subf %37, %22 : vector<4x256xf32>
    %39 = math.log %38 : vector<4x256xf32>
    %40 = arith.mulf %22, %22 : vector<4x256xf32>
    %41 = arith.mulf %39, %40 : vector<4x256xf32>
    %cst_19 = arith.constant 1.000000e+00 : f32
    %42 = vector.broadcast %cst_19 : f32 to vector<4x256xf32>
    %43 = arith.subf %42, %13 : vector<4x256xf32>
    %44 = arith.mulf %43, %43 : vector<4x256xf32>
    %45 = arith.mulf %44, %44 : vector<4x256xf32>
    %46 = arith.mulf %41, %45 : vector<4x256xf32>
    %47 = arith.mulf %46, %30 : vector<4x256xf32>
    %48 = vector.extract_strided_slice %7 {offsets = [4, 0], sizes = [1, 256], strides = [1, 1]} : vector<8x256xf32> to vector<1x256xf32>
    %c0_20 = arith.constant 0 : index
    %c0_21 = arith.constant 0 : index
    %c0_22 = arith.constant 0 : index
    %49 = vector.load %arg5[%c0_20, %c0_21, %c0_22] : memref<1x1x256xf32, #tpu.memory_space<vmem>>, vector<1x1x256xf32>
    %50 = vector.shape_cast %49 : vector<1x1x256xf32> to vector<1x256xf32>
    %51 = arith.negf %48 : vector<1x256xf32>
    %52 = math.exp %51 : vector<1x256xf32>
    %cst_23 = arith.constant 1.000000e+00 : f32
    %53 = vector.broadcast %cst_23 : f32 to vector<1x256xf32>
    %54 = arith.addf %53, %52 : vector<1x256xf32>
    %55 = arith.divf %53, %54 : vector<1x256xf32>
    %56 = math.absf %48 : vector<1x256xf32>
    %cst_24 = arith.constant 0.000000e+00 : f32
    %57 = vector.broadcast %cst_24 : f32 to vector<1x256xf32>
    %58 = arith.subf %57, %56 : vector<1x256xf32>
    %59 = math.exp %58 : vector<1x256xf32>
    %cst_25 = arith.constant 1.000000e+00 : f32
    %60 = vector.broadcast %cst_25 : f32 to vector<1x256xf32>
    %61 = arith.addf %60, %59 : vector<1x256xf32>
    %62 = math.log %61 : vector<1x256xf32>
    %cst_26 = arith.constant 0.000000e+00 : f32
    %63 = vector.broadcast %cst_26 : f32 to vector<1x256xf32>
    %64 = arith.minimumf %48, %63 : vector<1x256xf32>
    %65 = arith.subf %64, %62 : vector<1x256xf32>
    %cst_27 = arith.constant 0.000000e+00 : f32
    %66 = vector.broadcast %cst_27 : f32 to vector<1x256xf32>
    %67 = arith.subf %66, %48 : vector<1x256xf32>
    %cst_28 = arith.constant 0.000000e+00 : f32
    %68 = vector.broadcast %cst_28 : f32 to vector<1x256xf32>
    %69 = arith.minimumf %67, %68 : vector<1x256xf32>
    %70 = arith.subf %69, %62 : vector<1x256xf32>
    %cst_29 = arith.constant 1.000000e+00 : f32
    %71 = vector.broadcast %cst_29 : f32 to vector<1x256xf32>
    %72 = arith.cmpf oeq, %50, %71 : vector<1x256xf32>
    %73 = arith.extui %72 : vector<1x256xi1> to vector<1x256xi32>
    %74 = arith.sitofp %73 : vector<1x256xi32> to vector<1x256xf32>
    %cst_30 = arith.constant 1.000000e+00 : f32
    %75 = vector.broadcast %cst_30 : f32 to vector<1x256xf32>
    %76 = arith.cmpf olt, %50, %75 : vector<1x256xf32>
    %77 = arith.extui %76 : vector<1x256xi1> to vector<1x256xi32>
    %78 = arith.sitofp %77 : vector<1x256xi32> to vector<1x256xf32>
    %cst_31 = arith.constant 1.000000e+00 : f32
    %79 = vector.broadcast %cst_31 : f32 to vector<1x256xf32>
    %80 = arith.subf %79, %55 : vector<1x256xf32>
    %81 = arith.mulf %80, %80 : vector<1x256xf32>
    %82 = arith.mulf %65, %81 : vector<1x256xf32>
    %83 = arith.mulf %82, %74 : vector<1x256xf32>
    %84 = arith.mulf %55, %55 : vector<1x256xf32>
    %85 = arith.mulf %70, %84 : vector<1x256xf32>
    %cst_32 = arith.constant 1.000000e+00 : f32
    %86 = vector.broadcast %cst_32 : f32 to vector<1x256xf32>
    %87 = arith.subf %86, %50 : vector<1x256xf32>
    %88 = arith.mulf %87, %87 : vector<1x256xf32>
    %89 = arith.mulf %88, %88 : vector<1x256xf32>
    %90 = arith.mulf %85, %89 : vector<1x256xf32>
    %91 = arith.mulf %90, %78 : vector<1x256xf32>
    %c0_i32 = arith.constant 0 : i32
    %92 = arith.cmpi eq, %arg0, %c0_i32 : i32
    %93 = arith.extui %92 : i1 to i32
    %c0_i32_33 = arith.constant 0 : i32
    %94 = arith.cmpi ne, %93, %c0_i32_33 : i32
    scf.if %94 {
      %cst_47 = arith.constant 0.000000e+00 : f32
      %166 = vector.broadcast %cst_47 : f32 to vector<1x128xf32>
      %c0_48 = arith.constant 0 : index
      %c0_49 = arith.constant 0 : index
      %167 = vector.load %arg8[%c0_48, %c0_49] : memref<1x128xf32, #tpu.memory_space<vmem>>, vector<1x128xf32>
      tpu.vector_store %arg8[%c0_48, %c0_49], %166 {strides = array<i32>} : memref<1x128xf32, #tpu.memory_space<vmem>>, vector<1x128xf32>,
      %cst_50 = arith.constant 0.000000e+00 : f32
      %168 = vector.broadcast %cst_50 : f32 to vector<1x128xf32>
      %c0_51 = arith.constant 0 : index
      %c0_52 = arith.constant 0 : index
      %169 = vector.load %arg7[%c0_51, %c0_52] : memref<1x128xf32, #tpu.memory_space<vmem>>, vector<1x128xf32>
      tpu.vector_store %arg7[%c0_51, %c0_52], %168 {strides = array<i32>} : memref<1x128xf32, #tpu.memory_space<vmem>>, vector<1x128xf32>,
    } else {
    }
    %c0_i32_34 = arith.constant 0 : i32
    %95 = vector.broadcast %c0_i32_34 : i32 to vector<1x128xi32>
    %96 = arith.cmpi eq, %0, %95 : vector<1x128xi32>
    %97 = arith.extui %96 : vector<1x128xi1> to vector<1x128xi32>
    %98 = arith.sitofp %97 : vector<1x128xi32> to vector<1x128xf32>
    %99 = vector.shape_cast %36 : vector<4x256xf32> to vector<1x4x256xf32>
    %cst_35 = arith.constant dense<0.000000e+00> : vector<1xf32>
    %100 = vector.multi_reduction <add>, %99, %cst_35 [1, 2] : vector<1x4x256xf32> to vector<1xf32>
    %101 = vector.shape_cast %100 : vector<1xf32> to vector<1x1x1xf32>
    %102 = vector.extract %101[0, 0, 0] : f32 from vector<1x1x1xf32>
    %103 = vector.broadcast %102 : f32 to vector<1x128xf32>
    %104 = arith.mulf %98, %103 : vector<1x128xf32>
    %c1_i32 = arith.constant 1 : i32
    %105 = vector.broadcast %c1_i32 : i32 to vector<1x128xi32>
    %106 = arith.cmpi eq, %0, %105 : vector<1x128xi32>
    %107 = arith.extui %106 : vector<1x128xi1> to vector<1x128xi32>
    %108 = arith.sitofp %107 : vector<1x128xi32> to vector<1x128xf32>
    %109 = vector.shape_cast %47 : vector<4x256xf32> to vector<1x4x256xf32>
    %cst_36 = arith.constant dense<0.000000e+00> : vector<1xf32>
    %110 = vector.multi_reduction <add>, %109, %cst_36 [1, 2] : vector<1x4x256xf32> to vector<1xf32>
    %111 = vector.shape_cast %110 : vector<1xf32> to vector<1x1x1xf32>
    %112 = vector.extract %111[0, 0, 0] : f32 from vector<1x1x1xf32>
    %113 = vector.broadcast %112 : f32 to vector<1x128xf32>
    %114 = arith.mulf %108, %113 : vector<1x128xf32>
    %115 = arith.addf %104, %114 : vector<1x128xf32>
    %c2_i32 = arith.constant 2 : i32
    %116 = vector.broadcast %c2_i32 : i32 to vector<1x128xi32>
    %117 = arith.cmpi eq, %0, %116 : vector<1x128xi32>
    %118 = arith.extui %117 : vector<1x128xi1> to vector<1x128xi32>
    %119 = arith.sitofp %118 : vector<1x128xi32> to vector<1x128xf32>
    %120 = vector.shape_cast %26 : vector<4x256xf32> to vector<1x4x256xf32>
    %cst_37 = arith.constant dense<0.000000e+00> : vector<1xf32>
    %121 = vector.multi_reduction <add>, %120, %cst_37 [1, 2] : vector<1x4x256xf32> to vector<1xf32>
    %122 = vector.shape_cast %121 : vector<1xf32> to vector<1x1x1xf32>
    %123 = vector.extract %122[0, 0, 0] : f32 from vector<1x1x1xf32>
    %124 = vector.broadcast %123 : f32 to vector<1x128xf32>
    %125 = arith.mulf %119, %124 : vector<1x128xf32>
    %126 = arith.addf %115, %125 : vector<1x128xf32>
    %c3_i32 = arith.constant 3 : i32
    %127 = vector.broadcast %c3_i32 : i32 to vector<1x128xi32>
    %128 = arith.cmpi eq, %0, %127 : vector<1x128xi32>
    %129 = arith.extui %128 : vector<1x128xi1> to vector<1x128xi32>
    %130 = arith.sitofp %129 : vector<1x128xi32> to vector<1x128xf32>
    %131 = vector.shape_cast %83 : vector<1x256xf32> to vector<1x1x256xf32>
    %cst_38 = arith.constant dense<0.000000e+00> : vector<1xf32>
    %132 = vector.multi_reduction <add>, %131, %cst_38 [1, 2] : vector<1x1x256xf32> to vector<1xf32>
    %133 = vector.shape_cast %132 : vector<1xf32> to vector<1x1x1xf32>
    %134 = vector.extract %133[0, 0, 0] : f32 from vector<1x1x1xf32>
    %135 = vector.broadcast %134 : f32 to vector<1x128xf32>
    %136 = arith.mulf %130, %135 : vector<1x128xf32>
    %137 = arith.addf %126, %136 : vector<1x128xf32>
    %c4_i32 = arith.constant 4 : i32
    %138 = vector.broadcast %c4_i32 : i32 to vector<1x128xi32>
    %139 = arith.cmpi eq, %0, %138 : vector<1x128xi32>
    %140 = arith.extui %139 : vector<1x128xi1> to vector<1x128xi32>
    %141 = arith.sitofp %140 : vector<1x128xi32> to vector<1x128xf32>
    %142 = vector.shape_cast %91 : vector<1x256xf32> to vector<1x1x256xf32>
    %cst_39 = arith.constant dense<0.000000e+00> : vector<1xf32>
    %143 = vector.multi_reduction <add>, %142, %cst_39 [1, 2] : vector<1x1x256xf32> to vector<1xf32>
    %144 = vector.shape_cast %143 : vector<1xf32> to vector<1x1x1xf32>
    %145 = vector.extract %144[0, 0, 0] : f32 from vector<1x1x1xf32>
    %146 = vector.broadcast %145 : f32 to vector<1x128xf32>
    %147 = arith.mulf %141, %146 : vector<1x128xf32>
    %148 = arith.addf %137, %147 : vector<1x128xf32>
    %c5_i32 = arith.constant 5 : i32
    %149 = vector.broadcast %c5_i32 : i32 to vector<1x128xi32>
    %150 = arith.cmpi eq, %0, %149 : vector<1x128xi32>
    %151 = arith.extui %150 : vector<1x128xi1> to vector<1x128xi32>
    %152 = arith.sitofp %151 : vector<1x128xi32> to vector<1x128xf32>
    %153 = vector.shape_cast %74 : vector<1x256xf32> to vector<1x1x256xf32>
    %cst_40 = arith.constant dense<0.000000e+00> : vector<1xf32>
    %154 = vector.multi_reduction <add>, %153, %cst_40 [1, 2] : vector<1x1x256xf32> to vector<1xf32>
    %155 = vector.shape_cast %154 : vector<1xf32> to vector<1x1x1xf32>
    %156 = vector.extract %155[0, 0, 0] : f32 from vector<1x1x1xf32>
    %157 = vector.broadcast %156 : f32 to vector<1x128xf32>
    %158 = arith.mulf %152, %157 : vector<1x128xf32>
    %159 = arith.addf %148, %158 : vector<1x128xf32>
    %c0_41 = arith.constant 0 : index
    %c0_42 = arith.constant 0 : index
    %160 = vector.load %arg8[%c0_41, %c0_42] : memref<1x128xf32, #tpu.memory_space<vmem>>, vector<1x128xf32>
    %161 = arith.addf %160, %159 : vector<1x128xf32>
    %c0_43 = arith.constant 0 : index
    %c0_44 = arith.constant 0 : index
    %162 = vector.load %arg8[%c0_43, %c0_44] : memref<1x128xf32, #tpu.memory_space<vmem>>, vector<1x128xf32>
    tpu.vector_store %arg8[%c0_43, %c0_44], %161 {strides = array<i32>} : memref<1x128xf32, #tpu.memory_space<vmem>>, vector<1x128xf32>,
    %c1_i32_45 = arith.constant 1 : i32
    %163 = arith.cmpi eq, %arg0, %c1_i32_45 : i32
    %164 = arith.extui %163 : i1 to i32
    %c0_i32_46 = arith.constant 0 : i32
    %165 = arith.cmpi ne, %164, %c0_i32_46 : i32
    scf.if %165 {
      %c0_47 = arith.constant 0 : index
      %c0_48 = arith.constant 0 : index
      %166 = vector.load %arg8[%c0_47, %c0_48] : memref<1x128xf32, #tpu.memory_space<vmem>>, vector<1x128xf32>
      %c2_i32_49 = arith.constant 2 : i32
      %167 = vector.broadcast %c2_i32_49 : i32 to vector<1x128xi32>
      %168 = arith.cmpi eq, %0, %167 : vector<1x128xi32>
      %169 = arith.extui %168 : vector<1x128xi1> to vector<1x128xi32>
      %170 = arith.sitofp %169 : vector<1x128xi32> to vector<1x128xf32>
      %171 = arith.mulf %166, %170 : vector<1x128xf32>
      %172 = vector.shape_cast %171 : vector<1x128xf32> to vector<1x1x128xf32>
      %cst_50 = arith.constant dense<0.000000e+00> : vector<1xf32>
      %173 = vector.multi_reduction <add>, %172, %cst_50 [1, 2] : vector<1x1x128xf32> to vector<1xf32>
      %174 = vector.shape_cast %173 : vector<1xf32> to vector<1x1x1xf32>
      %175 = vector.extract %174[0, 0, 0] : f32 from vector<1x1x1xf32>
      %cst_51 = arith.constant 0.000000e+00 : f32
      %176 = arith.cmpf oeq, %175, %cst_51 : f32
      %c1_i32_52 = arith.constant 1 : i32
      %177 = vector.broadcast %c1_i32_52 : i32 to vector<1x128xi32>
      %178 = arith.cmpi eq, %0, %177 : vector<1x128xi32>
      %179 = arith.extui %178 : vector<1x128xi1> to vector<1x128xi32>
      %180 = arith.sitofp %179 : vector<1x128xi32> to vector<1x128xf32>
      %181 = arith.mulf %166, %180 : vector<1x128xf32>
      %182 = vector.shape_cast %181 : vector<1x128xf32> to vector<1x1x128xf32>
      %cst_53 = arith.constant dense<0.000000e+00> : vector<1xf32>
      %183 = vector.multi_reduction <add>, %182, %cst_53 [1, 2] : vector<1x1x128xf32> to vector<1xf32>
      %184 = vector.shape_cast %183 : vector<1xf32> to vector<1x1x1xf32>
      %185 = vector.extract %184[0, 0, 0] : f32 from vector<1x1x1xf32>
      %cst_54 = arith.constant 0.000000e+00 : f32
      %186 = arith.subf %cst_54, %185 : f32
      %c0_i32_55 = arith.constant 0 : i32
      %187 = vector.broadcast %c0_i32_55 : i32 to vector<1x128xi32>
      %188 = arith.cmpi eq, %0, %187 : vector<1x128xi32>
      %189 = arith.extui %188 : vector<1x128xi1> to vector<1x128xi32>
      %190 = arith.sitofp %189 : vector<1x128xi32> to vector<1x128xf32>
      %191 = arith.mulf %166, %190 : vector<1x128xf32>
      %192 = vector.shape_cast %191 : vector<1x128xf32> to vector<1x1x128xf32>
      %cst_56 = arith.constant dense<0.000000e+00> : vector<1xf32>
      %193 = vector.multi_reduction <add>, %192, %cst_56 [1, 2] : vector<1x1x128xf32> to vector<1xf32>
      %194 = vector.shape_cast %193 : vector<1xf32> to vector<1x1x1xf32>
      %195 = vector.extract %194[0, 0, 0] : f32 from vector<1x1x1xf32>
      %c1_i32_57 = arith.constant 1 : i32
      %196 = vector.broadcast %c1_i32_57 : i32 to vector<1x128xi32>
      %197 = arith.cmpi eq, %0, %196 : vector<1x128xi32>
      %198 = arith.extui %197 : vector<1x128xi1> to vector<1x128xi32>
      %199 = arith.sitofp %198 : vector<1x128xi32> to vector<1x128xf32>
      %200 = arith.mulf %166, %199 : vector<1x128xf32>
      %201 = vector.shape_cast %200 : vector<1x128xf32> to vector<1x1x128xf32>
      %cst_58 = arith.constant dense<0.000000e+00> : vector<1xf32>
      %202 = vector.multi_reduction <add>, %201, %cst_58 [1, 2] : vector<1x1x128xf32> to vector<1xf32>
      %203 = vector.shape_cast %202 : vector<1xf32> to vector<1x1x1xf32>
      %204 = vector.extract %203[0, 0, 0] : f32 from vector<1x1x1xf32>
      %205 = arith.addf %195, %204 : f32
      %cst_59 = arith.constant 0.000000e+00 : f32
      %206 = arith.subf %cst_59, %205 : f32
      %c2_i32_60 = arith.constant 2 : i32
      %207 = vector.broadcast %c2_i32_60 : i32 to vector<1x128xi32>
      %208 = arith.cmpi eq, %0, %207 : vector<1x128xi32>
      %209 = arith.extui %208 : vector<1x128xi1> to vector<1x128xi32>
      %210 = arith.sitofp %209 : vector<1x128xi32> to vector<1x128xf32>
      %211 = arith.mulf %166, %210 : vector<1x128xf32>
      %212 = vector.shape_cast %211 : vector<1x128xf32> to vector<1x1x128xf32>
      %cst_61 = arith.constant dense<0.000000e+00> : vector<1xf32>
      %213 = vector.multi_reduction <add>, %212, %cst_61 [1, 2] : vector<1x1x128xf32> to vector<1xf32>
      %214 = vector.shape_cast %213 : vector<1xf32> to vector<1x1x1xf32>
      %215 = vector.extract %214[0, 0, 0] : f32 from vector<1x1x1xf32>
      %cst_62 = arith.constant 1.000000e+00 : f32
      %216 = arith.maximumf %215, %cst_62 : f32
      %217 = arith.divf %206, %216 : f32
      %218 = arith.select %176, %186, %217 : f32
      %c5_i32_63 = arith.constant 5 : i32
      %219 = vector.broadcast %c5_i32_63 : i32 to vector<1x128xi32>
      %220 = arith.cmpi eq, %0, %219 : vector<1x128xi32>
      %221 = arith.extui %220 : vector<1x128xi1> to vector<1x128xi32>
      %222 = arith.sitofp %221 : vector<1x128xi32> to vector<1x128xf32>
      %223 = arith.mulf %166, %222 : vector<1x128xf32>
      %224 = vector.shape_cast %223 : vector<1x128xf32> to vector<1x1x128xf32>
      %cst_64 = arith.constant dense<0.000000e+00> : vector<1xf32>
      %225 = vector.multi_reduction <add>, %224, %cst_64 [1, 2] : vector<1x1x128xf32> to vector<1xf32>
      %226 = vector.shape_cast %225 : vector<1xf32> to vector<1x1x1xf32>
      %227 = vector.extract %226[0, 0, 0] : f32 from vector<1x1x1xf32>
      %cst_65 = arith.constant 0.000000e+00 : f32
      %228 = arith.cmpf oeq, %227, %cst_65 : f32
      %c4_i32_66 = arith.constant 4 : i32
      %229 = vector.broadcast %c4_i32_66 : i32 to vector<1x128xi32>
      %230 = arith.cmpi eq, %0, %229 : vector<1x128xi32>
      %231 = arith.extui %230 : vector<1x128xi1> to vector<1x128xi32>
      %232 = arith.sitofp %231 : vector<1x128xi32> to vector<1x128xf32>
      %233 = arith.mulf %166, %232 : vector<1x128xf32>
      %234 = vector.shape_cast %233 : vector<1x128xf32> to vector<1x1x128xf32>
      %cst_67 = arith.constant dense<0.000000e+00> : vector<1xf32>
      %235 = vector.multi_reduction <add>, %234, %cst_67 [1, 2] : vector<1x1x128xf32> to vector<1xf32>
      %236 = vector.shape_cast %235 : vector<1xf32> to vector<1x1x1xf32>
      %237 = vector.extract %236[0, 0, 0] : f32 from vector<1x1x1xf32>
      %cst_68 = arith.constant 0.000000e+00 : f32
      %238 = arith.subf %cst_68, %237 : f32
      %c3_i32_69 = arith.constant 3 : i32
      %239 = vector.broadcast %c3_i32_69 : i32 to vector<1x128xi32>
      %240 = arith.cmpi eq, %0, %239 : vector<1x128xi32>
      %241 = arith.extui %240 : vector<1x128xi1> to vector<1x128xi32>
      %242 = arith.sitofp %241 : vector<1x128xi32> to vector<1x128xf32>
      %243 = arith.mulf %166, %242 : vector<1x128xf32>
      %244 = vector.shape_cast %243 : vector<1x128xf32> to vector<1x1x128xf32>
      %cst_70 = arith.constant dense<0.000000e+00> : vector<1xf32>
      %245 = vector.multi_reduction <add>, %244, %cst_70 [1, 2] : vector<1x1x128xf32> to vector<1xf32>
      %246 = vector.shape_cast %245 : vector<1xf32> to vector<1x1x1xf32>
      %247 = vector.extract %246[0, 0, 0] : f32 from vector<1x1x1xf32>
      %c4_i32_71 = arith.constant 4 : i32
      %248 = vector.broadcast %c4_i32_71 : i32 to vector<1x128xi32>
      %249 = arith.cmpi eq, %0, %248 : vector<1x128xi32>
      %250 = arith.extui %249 : vector<1x128xi1> to vector<1x128xi32>
      %251 = arith.sitofp %250 : vector<1x128xi32> to vector<1x128xf32>
      %252 = arith.mulf %166, %251 : vector<1x128xf32>
      %253 = vector.shape_cast %252 : vector<1x128xf32> to vector<1x1x128xf32>
      %cst_72 = arith.constant dense<0.000000e+00> : vector<1xf32>
      %254 = vector.multi_reduction <add>, %253, %cst_72 [1, 2] : vector<1x1x128xf32> to vector<1xf32>
      %255 = vector.shape_cast %254 : vector<1xf32> to vector<1x1x1xf32>
      %256 = vector.extract %255[0, 0, 0] : f32 from vector<1x1x1xf32>
      %257 = arith.addf %247, %256 : f32
      %cst_73 = arith.constant 0.000000e+00 : f32
      %258 = arith.subf %cst_73, %257 : f32
      %c5_i32_74 = arith.constant 5 : i32
      %259 = vector.broadcast %c5_i32_74 : i32 to vector<1x128xi32>
      %260 = arith.cmpi eq, %0, %259 : vector<1x128xi32>
      %261 = arith.extui %260 : vector<1x128xi1> to vector<1x128xi32>
      %262 = arith.sitofp %261 : vector<1x128xi32> to vector<1x128xf32>
      %263 = arith.mulf %166, %262 : vector<1x128xf32>
      %264 = vector.shape_cast %263 : vector<1x128xf32> to vector<1x1x128xf32>
      %cst_75 = arith.constant dense<0.000000e+00> : vector<1xf32>
      %265 = vector.multi_reduction <add>, %264, %cst_75 [1, 2] : vector<1x1x128xf32> to vector<1xf32>
      %266 = vector.shape_cast %265 : vector<1xf32> to vector<1x1x1xf32>
      %267 = vector.extract %266[0, 0, 0] : f32 from vector<1x1x1xf32>
      %cst_76 = arith.constant 1.000000e+00 : f32
      %268 = arith.maximumf %267, %cst_76 : f32
      %269 = arith.divf %258, %268 : f32
      %270 = arith.select %228, %238, %269 : f32
      %c0_i32_77 = arith.constant 0 : i32
      %271 = vector.broadcast %c0_i32_77 : i32 to vector<1x128xi32>
      %272 = arith.cmpi eq, %0, %271 : vector<1x128xi32>
      %273 = arith.extui %272 : vector<1x128xi1> to vector<1x128xi32>
      %274 = arith.sitofp %273 : vector<1x128xi32> to vector<1x128xf32>
      %275 = vector.broadcast %218 : f32 to vector<1x128xf32>
      %276 = arith.mulf %274, %275 : vector<1x128xf32>
      %c1_i32_78 = arith.constant 1 : i32
      %277 = vector.broadcast %c1_i32_78 : i32 to vector<1x128xi32>
      %278 = arith.cmpi eq, %0, %277 : vector<1x128xi32>
      %279 = arith.extui %278 : vector<1x128xi1> to vector<1x128xi32>
      %280 = arith.sitofp %279 : vector<1x128xi32> to vector<1x128xf32>
      %281 = vector.broadcast %270 : f32 to vector<1x128xf32>
      %282 = arith.mulf %280, %281 : vector<1x128xf32>
      %283 = arith.addf %276, %282 : vector<1x128xf32>
      %c0_79 = arith.constant 0 : index
      %c0_80 = arith.constant 0 : index
      %284 = vector.load %arg7[%c0_79, %c0_80] : memref<1x128xf32, #tpu.memory_space<vmem>>, vector<1x128xf32>
      tpu.vector_store %arg7[%c0_79, %c0_80], %283 {strides = array<i32>} : memref<1x128xf32, #tpu.memory_space<vmem>>, vector<1x128xf32>,
    } else {
    }
    return
  }
  func.func @transform_0(%arg0: i32) -> (i32, i32, i32) {
    %c0_i32 = arith.constant 0 : i32
    %c0_i32_0 = arith.constant 0 : i32
    %c0_i32_1 = arith.constant 0 : i32
    return %arg0, %c0_i32, %c0_i32_0 : i32, i32, i32
  }
  func.func @transform_1(%arg0: i32) -> (i32, i32) {
    %c0_i32 = arith.constant 0 : i32
    %c0_i32_0 = arith.constant 0 : i32
    %c0_i32_1 = arith.constant 0 : i32
    return %c0_i32, %c0_i32_0 : i32, i32
  }
  func.func @transform_2(%arg0: i32) -> (i32, i32) {
    %c0_i32 = arith.constant 0 : i32
    %c0_i32_0 = arith.constant 0 : i32
    %c0_i32_1 = arith.constant 0 : i32
    return %c0_i32, %c0_i32_0 : i32, i32
  }
  func.func @transform_3(%arg0: i32) -> (i32, i32, i32) {
    %c0_i32 = arith.constant 0 : i32
    %c0_i32_0 = arith.constant 0 : i32
    %c0_i32_1 = arith.constant 0 : i32
    return %arg0, %c0_i32, %c0_i32_0 : i32, i32, i32
  }
  func.func @transform_4(%arg0: i32) -> (i32, i32, i32) {
    %c0_i32 = arith.constant 0 : i32
    %c0_i32_0 = arith.constant 0 : i32
    %c0_i32_1 = arith.constant 0 : i32
    return %arg0, %c0_i32, %c0_i32_0 : i32, i32, i32
  }
  func.func @transform_5(%arg0: i32) -> (i32, i32, i32) {
    %c0_i32 = arith.constant 0 : i32
    %c0_i32_0 = arith.constant 0 : i32
    %c0_i32_1 = arith.constant 0 : i32
    return %arg0, %c0_i32, %c0_i32_0 : i32, i32, i32
  }
  func.func @transform_6(%arg0: i32) -> (i32, i32) {
    %c0_i32 = arith.constant 0 : i32
    %c0_i32_0 = arith.constant 0 : i32
    %c0_i32_1 = arith.constant 0 : i32
    return %c0_i32, %c0_i32_0 : i32, i32
  }
}

</mosaic_0001>

<llo_original>
// kernel: tpu_custom_call.1
$region0: #{tpu_custom_call.1}
  #allocation0 [shape = 'u32[]', space=smem, size = 0x4, offset = 0x4, fixed_abs, tag = 'smem constant byte address 0x4 - core index']
  #allocation1 [shape = 'u32[144,128]{1,0:T(1,128)}', space=vmem, size = 0x12000, scoped, tag = 'internal scratch']
  #allocation2 [shape = 'f32[1,128]{1,0:T(1,128)}', space=vmem, size = 0x200, scoped, tag = 'scratch operand']
  %s0 = inlined_call_operand.vmem [shape: bf16[2,4,256], index: 0, kind: input, shape index: {}]
  %s1 = inlined_call_operand.vmem [shape: bf16[8,4], index: 1, kind: input, shape index: {}]
  %s2 = inlined_call_operand.vmem [shape: f32[8,1], index: 2, kind: input, shape index: {}]
  %s3 = inlined_call_operand.vmem [shape: f32[2,4,256], index: 3, kind: input, shape index: {}]
  %s4 = inlined_call_operand.vmem [shape: f32[2,1,256], index: 4, kind: input, shape index: {}]
  %s5 = inlined_call_operand.hbm [shape: f32[2,8,256], index: 5, kind: output, shape index: {0}]
  %s6 = inlined_call_operand.hbm [shape: f32[1,128], index: 6, kind: output, shape index: {1}]
  %7 = xla_tuple %s5, %s6
  %s8 = sld [smem:[#allocation0]]
  $region69: #{tpu_custom_call.1} parent=0
    _
  %s10 = ssub.s32 1, %s8
  %s11 = scalar_select 0, %s10, %s8
  $region1: #{tpu_custom_call.1} parent=0
    #allocation3 [shape = 'u8[16384]{0}', space=vmem, size = 0x4000, scoped, tag = 'output window, operand 0']
    #allocation4 [shape = 's32[2]{0}', space=sflag, size = 0x8, scoped, tag = 'scoped memory for tpu_custom_call.1']
    #allocation5 [shape = 'u8[512]{0}', space=vmem, size = 0x400, scoped, tag = 'output window, operand 1, single buffered']
    #allocation6 [shape = 's32[1]{0}', space=sflag, size = 0x4, scoped, tag = 'scoped memory for tpu_custom_call.1']
    %12 = vsyncpa [#allocation4], 0
    %s13 = scalar_lea.sflag [#allocation4], 1
    %14 = vsyncpa %s13, 0
    %15 = vsyncpa [#allocation6], 0
    loop: start=0, step=1, limit=4
    $region2: #{tpu_custom_call.1} parent=1 // loop_pre_header
      _
    $region3: #{tpu_custom_call.1} parent=1 // loop_header
      %s17 = sphi 0, %s21
      %p18 = scmp.ge.s32.totalorder %s17, 4
      %s27 = sphi 0, %s29
      %s30 = sphi 0, %s27
      %s31 = sphi 0, %s30
      %s47 = sphi 0, %s31
      %s51 = sphi 0, %s51
      %s53 = sphi 0, %s51
      %s54 = sphi 0, %s53
      %s68 = sphi 0, %s54
      %s72 = sphi 0, %s72
      %s74 = sphi 0, %s72
      %s75 = sphi 0, %s74
      %s89 = sphi 0, %s75
      %s95 = sphi 0, %s97
      %s98 = sphi 0, %s95
      %s99 = sphi 0, %s98
      %s115 = sphi 0, %s99
      %s121 = sphi 0, %s123
      %s124 = sphi 0, %s121
      %s125 = sphi 0, %s124
      %s141 = sphi 0, %s125
      %s147 = sphi 0, %s149
      %s150 = sphi 0, %s147
      %s151 = sphi 0, %s150
      %s167 = sphi 0, %s151
      %s171 = sphi 0, %s171
      %s173 = sphi 0, %s171
      %s174 = sphi 0, %s173
      %s188 = sphi 0, %s174
    $region4: #{tpu_custom_call.1} parent=1 // loop_header_branch
      %20 = sbr.rel (%p18) target = $region8
    $region5: #{tpu_custom_call.1} parent=1 // loop_body
      %s22 = ssub.s32 %s17, 1
      %s23 = ssub.s32 %s17, 2
      %s24 = sadd.s32 %s17, 1
      %s25 = ssub.s32 %s17, %s24
      %p26 = scmp.eq.s32.totalorder %s25, 0
      %s28 = sadd.s32 %s27, 1
      %s29 = scalar_select %p26, %s27, %s28
      %p32 = pneg %p26
      %p33 = scmp.eq.s32.totalorder %s17, 1
      %p34 = por %p32, %p33
      %p35 = scmp.ne.s32.totalorder %s27, %s30
      %p36 = scmp.eq.s32.totalorder %s17, 0
      %p37 = por %p35, %p36
      %p38 = scmp.ne.s32.totalorder %s27, %s30
      %p39 = scmp.eq.s32.totalorder %s22, 1
      %p40 = por %p38, %p39
      %p41 = scmp.ne.s32.totalorder %s30, %s31
      %p42 = scmp.eq.s32.totalorder %s22, 0
      %p43 = por %p41, %p42
      %p44 = scmp.ne.s32.totalorder %s30, %s31
      %p45 = scmp.eq.s32.totalorder %s23, 1
      %p46 = por %p44, %p45
      %p48 = scmp.ne.s32.totalorder %s31, %s47
      %p49 = scmp.eq.s32.totalorder %s23, 0
      %p50 = por %p48, %p49
      %s52 = sadd.s32 %s51, 1
      %p55 = scmp.eq.s32.totalorder %s17, 1
      %p56 = scmp.ne.s32.totalorder %s51, %s53
      %p57 = scmp.eq.s32.totalorder %s17, 0
      %p58 = por %p56, %p57
      %p59 = scmp.ne.s32.totalorder %s51, %s53
      %p60 = scmp.eq.s32.totalorder %s22, 1
      %p61 = por %p59, %p60
      %p62 = scmp.ne.s32.totalorder %s53, %s54
      %p63 = scmp.eq.s32.totalorder %s22, 0
      %p64 = por %p62, %p63
      %p65 = scmp.ne.s32.totalorder %s53, %s54
      %p66 = scmp.eq.s32.totalorder %s23, 1
      %p67 = por %p65, %p66
      %p69 = scmp.ne.s32.totalorder %s54, %s68
      %p70 = scmp.eq.s32.totalorder %s23, 0
      %p71 = por %p69, %p70
      %s73 = sadd.s32 %s72, 1
      %p76 = scmp.eq.s32.totalorder %s17, 1
      %p77 = scmp.ne.s32.totalorder %s72, %s74
      %p78 = scmp.eq.s32.totalorder %s17, 0
      %p79 = por %p77, %p78
      %p80 = scmp.ne.s32.totalorder %s72, %s74
      %p81 = scmp.eq.s32.totalorder %s22, 1
      %p82 = por %p80, %p81
      %p83 = scmp.ne.s32.totalorder %s74, %s75
      %p84 = scmp.eq.s32.totalorder %s22, 0
      %p85 = por %p83, %p84
      %p86 = scmp.ne.s32.totalorder %s74, %s75
      %p87 = scmp.eq.s32.totalorder %s23, 1
      %p88 = por %p86, %p87
      %p90 = scmp.ne.s32.totalorder %s75, %s89
      %p91 = scmp.eq.s32.totalorder %s23, 0
      %p92 = por %p90, %p91
      %s93 = ssub.s32 %s17, %s24
      %p94 = scmp.eq.s32.totalorder %s93, 0
      %s96 = sadd.s32 %s95, 1
      %s97 = scalar_select %p94, %s95, %s96
      %p100 = pneg %p94
      %p101 = scmp.eq.s32.totalorder %s17, 1
      %p102 = por %p100, %p101
      %p103 = scmp.ne.s32.totalorder %s95, %s98
      %p104 = scmp.eq.s32.totalorder %s17, 0
      %p105 = por %p103, %p104
      %p106 = scmp.ne.s32.totalorder %s95, %s98
      %p107 = scmp.eq.s32.totalorder %s22, 1
      %p108 = por %p106, %p107
      %p109 = scmp.ne.s32.totalorder %s98, %s99
      %p110 = scmp.eq.s32.totalorder %s22, 0
      %p111 = por %p109, %p110
      %p112 = scmp.ne.s32.totalorder %s98, %s99
      %p113 = scmp.eq.s32.totalorder %s23, 1
      %p114 = por %p112, %p113
      %p116 = scmp.ne.s32.totalorder %s99, %s115
      %p117 = scmp.eq.s32.totalorder %s23, 0
      %p118 = por %p116, %p117
      %s119 = ssub.s32 %s17, %s24
      %p120 = scmp.eq.s32.totalorder %s119, 0
      %s122 = sadd.s32 %s121, 1
      %s123 = scalar_select %p120, %s121, %s122
      %p126 = pneg %p120
      %p127 = scmp.eq.s32.totalorder %s17, 1
      %p128 = por %p126, %p127
      %p129 = scmp.ne.s32.totalorder %s121, %s124
      %p130 = scmp.eq.s32.totalorder %s17, 0
      %p131 = por %p129, %p130
      %p132 = scmp.ne.s32.totalorder %s121, %s124
      %p133 = scmp.eq.s32.totalorder %s22, 1
      %p134 = por %p132, %p133
      %p135 = scmp.ne.s32.totalorder %s124, %s125
      %p136 = scmp.eq.s32.totalorder %s22, 0
      %p137 = por %p135, %p136
      %p138 = scmp.ne.s32.totalorder %s124, %s125
      %p139 = scmp.eq.s32.totalorder %s23, 1
      %p140 = por %p138, %p139
      %p142 = scmp.ne.s32.totalorder %s125, %s141
      %p143 = scmp.eq.s32.totalorder %s23, 0
      %p144 = por %p142, %p143
      %s145 = ssub.s32 %s17, %s24
      %p146 = scmp.eq.s32.totalorder %s145, 0
      %s148 = sadd.s32 %s147, 1
      %s149 = scalar_select %p146, %s147, %s148
      %p152 = pneg %p146
      %p153 = scmp.eq.s32.totalorder %s17, 1
      %p154 = por %p152, %p153
      %p155 = scmp.ne.s32.totalorder %s147, %s150
      %p156 = scmp.eq.s32.totalorder %s17, 0
      %p157 = por %p155, %p156
      %p158 = scmp.ne.s32.totalorder %s147, %s150
      %p159 = scmp.eq.s32.totalorder %s22, 1
      %p160 = por %p158, %p159
      %p161 = scmp.ne.s32.totalorder %s150, %s151
      %p162 = scmp.eq.s32.totalorder %s22, 0
      %p163 = por %p161, %p162
      %p164 = scmp.ne.s32.totalorder %s150, %s151
      %p165 = scmp.eq.s32.totalorder %s23, 1
      %p166 = por %p164, %p165
      %p168 = scmp.ne.s32.totalorder %s151, %s167
      %p169 = scmp.eq.s32.totalorder %s23, 0
      %p170 = por %p168, %p169
      %s172 = sadd.s32 %s171, 1
      %p175 = scmp.eq.s32.totalorder %s17, 1
      %p176 = scmp.ne.s32.totalorder %s171, %s173
      %p177 = scmp.eq.s32.totalorder %s17, 0
      %p178 = por %p176, %p177
      %p179 = scmp.ne.s32.totalorder %s171, %s173
      %p180 = scmp.eq.s32.totalorder %s22, 1
      %p181 = por %p179, %p180
      %p182 = scmp.ne.s32.totalorder %s173, %s174
      %p183 = scmp.eq.s32.totalorder %s22, 0
      %p184 = por %p182, %p183
      %p185 = scmp.ne.s32.totalorder %s173, %s174
      %p186 = scmp.eq.s32.totalorder %s23, 1
      %p187 = por %p185, %p186
      %p189 = scmp.ne.s32.totalorder %s174, %s188
      %p190 = scmp.eq.s32.totalorder %s23, 0
      %p191 = por %p189, %p190
      %p192 = scmp.le.s32.totalorder 1, %s17
      %p193 = scmp.lt.s32.totalorder %s17, 3
      %p194 = pnand %p192, %p193
      %p195 = pneg %p194
      // Predicated region
      $region9: #{tpu_custom_call.1} parent=5 // pred_check
        _
      $region10: #{tpu_custom_call.1} parent=5 // pred_check_branch
        %197 = sbr.rel (%p194) target = $region12
      $region11: #{tpu_custom_call.1} parent=5 // pred_region
        %s198 = ssub.s32 %s17, 1
        // Predicated region
        $region13: #{tpu_custom_call.1} parent=11 // pred_check
          %p199 = pneg %p64
        $region14: #{tpu_custom_call.1} parent=11 // pred_check_branch
          %201 = sbr.rel (%p199) target = $region16
        $region15: #{tpu_custom_call.1} parent=11 // pred_region
          _
        $region16: #{tpu_custom_call.1} parent=11 // pred_fallthru
          _
        // Predicated region
        $region17: #{tpu_custom_call.1} parent=11 // pred_check
          %p202 = pneg %p85
        $region18: #{tpu_custom_call.1} parent=11 // pred_check_branch
          %204 = sbr.rel (%p202) target = $region20
        $region19: #{tpu_custom_call.1} parent=11 // pred_region
          _
        $region20: #{tpu_custom_call.1} parent=11 // pred_fallthru
          _
      $region12: #{tpu_custom_call.1} parent=5 // pred_fallthru
        _
      %p205 = scmp.lt.s32.totalorder %s17, 2
      // Predicated region
      $region21: #{tpu_custom_call.1} parent=5 // pred_check
        %p206 = pneg %p205
      $region22: #{tpu_custom_call.1} parent=5 // pred_check_branch
        %208 = sbr.rel (%p206) target = $region24
      $region23: #{tpu_custom_call.1} parent=5 // pred_region
        // Predicated region
        $region25: #{tpu_custom_call.1} parent=23 // pred_check
          %p209 = pneg %p37
        $region26: #{tpu_custom_call.1} parent=23 // pred_check_branch
          %211 = sbr.rel (%p209) target = $region28
        $region27: #{tpu_custom_call.1} parent=23 // pred_region
          %p212 = scmp.lt.s32.totalorder %s17, 1
          %s213 = scalar_select %p212, %s17, 1
          %s214 = smul.addr %s213, 2
          %s215 = smul.addr %s214, 2
          %s216 = scalar_lea.vmem %s0, %s215
        $region28: #{tpu_custom_call.1} parent=23 // pred_fallthru
          _
        // Predicated region
        $region29: #{tpu_custom_call.1} parent=23 // pred_check
          %p217 = pneg %p105
        $region30: #{tpu_custom_call.1} parent=23 // pred_check_branch
          %219 = sbr.rel (%p217) target = $region32
        $region31: #{tpu_custom_call.1} parent=23 // pred_region
          %p220 = scmp.lt.s32.totalorder %s17, 1
          %s221 = scalar_select %p220, %s17, 1
          %s222 = smul.addr %s221, 2
          %s223 = smul.addr %s222, 4
          %s224 = scalar_lea.vmem %s3, %s223
        $region32: #{tpu_custom_call.1} parent=23 // pred_fallthru
          _
        // Predicated region
        $region33: #{tpu_custom_call.1} parent=23 // pred_check
          %p225 = pneg %p131
        $region34: #{tpu_custom_call.1} parent=23 // pred_check_branch
          %227 = sbr.rel (%p225) target = $region36
        $region35: #{tpu_custom_call.1} parent=23 // pred_region
          %p228 = scmp.lt.s32.totalorder %s17, 1
          %s229 = scalar_select %p228, %s17, 1
          %s230 = smul.addr %s229, 2
          %s231 = scalar_lea.vmem %s4, %s230
        $region36: #{tpu_custom_call.1} parent=23 // pred_fallthru
          _
      $region24: #{tpu_custom_call.1} parent=5 // pred_fallthru
        _
      %p232 = scmp.le.s32.totalorder 1, %s17
      %p233 = scmp.lt.s32.totalorder %s17, 3
      %p234 = pnand %p232, %p233
      %p235 = pneg %p234
      // Predicated region
      $region37: #{tpu_custom_call.1} parent=5 // pred_check
        _
      $region38: #{tpu_custom_call.1} parent=5 // pred_check_branch
        %237 = sbr.rel (%p234) target = $region40
      $region39: #{tpu_custom_call.1} parent=5 // pred_region
        %s238 = ssub.s32 %s17, 1
        %p239 = scmp.lt.s32.totalorder %s22, 1
        %s240 = scalar_select %p239, %s22, 1
        %s241 = smul.addr %s240, 2
        %s242 = smul.addr %s241, 2
        %s243 = scalar_lea.vmem %s0, %s242
        %p244 = pneg %p43
        %p245 = pneg %p40
        %p246 = pneg %p64
        %p247 = pneg %p61
        %p248 = pneg %p85
        %p249 = pneg %p82
        %p250 = scmp.lt.s32.totalorder %s22, 1
        %s251 = scalar_select %p250, %s22, 1
        %s252 = smul.addr %s251, 2
        %s253 = smul.addr %s252, 4
        %s254 = scalar_lea.vmem %s3, %s253
        %p255 = pneg %p111
        %p256 = pneg %p108
        %p257 = scmp.lt.s32.totalorder %s22, 1
        %s258 = scalar_select %p257, %s22, 1
        %s259 = smul.addr %s258, 2
        %s260 = scalar_lea.vmem %s4, %s259
        %p261 = pneg %p137
        %p262 = pneg %p134
        %p263 = pneg %p163
        %p264 = pneg %p160
        %s265 = sand.u32 %s150, 1
        %s266 = scalar_lea.sflag [#allocation4], %s265
        %s267 = sand.u32 %s150, 1
        %s268 = smul.addr %s267, 16
        %s269 = scalar_lea.vmem [#allocation3], %s268
        %p270 = pneg %p184
        %p271 = pneg %p181
        %p272 = scmp.lt.s32.totalorder %s22, 1
        %s273 = scalar_select %p272, %s22, 1
        %s274 = smul.addr %s273, 2
        %s275 = smul.addr %s274, 2
        %s276 = scalar_lea.vmem %s0, %s275
        %p277 = scmp.lt.s32.totalorder %s22, 1
        %s278 = scalar_select %p277, %s22, 1
        %s279 = smul.addr %s278, 2
        %s280 = smul.addr %s279, 4
        %s281 = scalar_lea.vmem %s3, %s280
        %p282 = scmp.lt.s32.totalorder %s22, 1
        %s283 = scalar_select %p282, %s22, 1
        %s284 = smul.addr %s283, 2
        %s285 = scalar_lea.vmem %s4, %s284
        %v287 = vlaneseq
        %v288 = vand.u32 %v287, 127
        %v289 = vld [vmem:[%s1] sm:$0xf]
        %v290 = vld [vmem:[%s276] sm:$0xf]
        %v291 = vld [vmem:[%s2] sm:$0xff]
        %293 = vset.pattern.permute.xlu0 0
        %294 = vperm.xlu0 %293, %v291
        %v295 = vpop.permute.xlu0 %294
        %v299 = vunpack.c.l.s4 1983009808
        %v300 = vunpack.c.0.s8 %v299
        %v301 = vlaneseq
        %v302 = vshrl.u32 %v301, 7
        %v303 = vsub.s32 %v300, %v302
        %v304 = vrot.slane %v290, %v303
        %v305 = vcombine.high %v304, %v304
        %vm306 = vcmask 31744
        %v308 = vsel %vm306, %v289, 0
        %vm310 = vcmask 1041408
        %v312 = vsel %vm310, %v304, 0
        %v315 = vsel %vm310, %v305, 0
        %317 = vmatprep.subr.bf16.mxu0 %v315
        %318 = vmatpush1.bf16.msra.mxu0 %v312
        %319 = vmatprep.subr.bf16.mxu0 0
        %320 = vmatpush1.bf16.msra.mxu0 0
        %321 = vmatprep.subr.bf16.mxu0 0
        %322 = vmatpush1.bf16.msra.mxu0 0
        %323 = vmatprep.subr.bf16.mxu0 0
        %324 = vmatpush1.bf16.msra.mxu0 0
        %325 = vmatprep.subr.bf16.mxu0 0
        %326 = vmatpush1.bf16.msra.mxu0 0
        %327 = vmatprep.subr.bf16.mxu0 0
        %328 = vmatpush1.bf16.msra.mxu0 0
        %329 = vmatprep.subr.bf16.mxu0 0
        %330 = vmatpush1.bf16.msra.mxu0 0
        %331 = vmatprep.subr.bf16.mxu0 0
        %332 = vmatpush1.bf16.msra.mxu0 0
        %333 = vmatprep.subr.bf16.mxu0 0
        %334 = vmatpush1.bf16.msra.mxu0 0
        %335 = vmatprep.subr.bf16.mxu0 0
        %336 = vmatpush1.bf16.msra.mxu0 0
        %337 = vmatprep.subr.bf16.mxu0 0
        %338 = vmatpush1.bf16.msra.mxu0 0
        %339 = vmatprep.subr.bf16.mxu0 0
        %340 = vmatpush1.bf16.msra.mxu0 0
        %341 = vmatprep.subr.bf16.mxu0 0
        %342 = vmatpush1.bf16.msra.mxu0 0
        %343 = vmatprep.subr.bf16.mxu0 0
        %344 = vmatpush1.bf16.msra.mxu0 0
        %345 = vmatprep.subr.bf16.mxu0 0
        %346 = vmatpush1.bf16.msra.mxu0 0
        %347 = vmatprep.subr.bf16.mxu0 0
        %348 = vmatpush1.bf16.msra.mxu0 0
        %349 = vmatprep.mubr.bf16.mxu0 0
        %350 = vmatmul.mubr.bf16.gmra.mrb[0].mxu0 %v308
        %v351 = vpop.f32.mrb[0].mxu0
        %v352 = vadd.f32 %v295, %v351
        %v353 = vpop.f32.mrb[0].mxu0
        %v354 = vadd.f32 %v295, %v353
        %v355 = vpop.f32.mrb[0].mxu0
        %v356 = vpop.f32.mrb[0].mxu0
        %357 = vdwg.mxu0
        %358 = vst [vmem:[%s269] sm:$0xff] %v352
        %359 = vst [vmem:[%s269 + $0x8] sm:$0xff] %v354
        %v360 = vld [vmem:[%s281] sm:$0xff]
        %v361 = vxor.u32 %v352, 2147483648
        %v362 = vxor.u32 %v354, 2147483648
        %v363 = vmul.f32 %v361, 1.442695
        %v364 = vpow.pop %v363
        %v365 = vmul.f32 %v362, 1.442695
        %v366 = vpow.pop %v365
        %v367 = vadd.f32 %v364, 1.0
        %v368 = vadd.f32 %v366, 1.0
        %v369 = vrcp.pop %v367
        %v370 = vmul.f32 1.0, %v369
        %v371 = vrcp.pop %v368
        %v372 = vmul.f32 1.0, %v371
        %v373 = vmax.f32 %v370, 0.0001
        %v374 = vmax.f32 %v372, 0.0001
        %v375 = vmin.f32 %v373, 0.9999
        %v376 = vmin.f32 %v374, 0.9999
        %vm377 = vcmp.eq.f32.partialorder %v360, 1.0
        %v378 = vsel %vm377, 1, 0
        %v379 = vcvt.s32.f32 %v378
        %vm380 = vcmp.lt.f32.partialorder %v360, 1.0
        %v381 = vsel %vm380, 1, 0
        %v382 = vcvt.s32.f32 %v381
        %v383 = vlog2.pop %v375
        %v384 = vmul.f32 %v383, 0.6931472
        %v385 = vlog2.pop %v376
        %v386 = vmul.f32 %v385, 0.6931472
        %v387 = vsub.f32 1.0, %v375
        %v388 = vsub.f32 1.0, %v376
        %v389 = vmul.f32 %v387, %v387
        %v390 = vmul.f32 %v388, %v388
        %v391 = vmul.f32 %v384, %v389
        %v392 = vmul.f32 %v386, %v390
        %v394 = vcombine.high %v379, %v379
        %v396 = vmul.f32 %v391, %v379
        %v397 = vmul.f32 %v392, %v394
        %v398 = vlog2.pop %v387
        %v399 = vmul.f32 %v398, 0.6931472
        %v400 = vlog2.pop %v388
        %v401 = vmul.f32 %v400, 0.6931472
        %v402 = vmul.f32 %v375, %v375
        %v403 = vmul.f32 %v376, %v376
        %v404 = vmul.f32 %v399, %v402
        %v405 = vmul.f32 %v401, %v403
        %v406 = vsub.f32 1.0, %v360
        %v407 = vmul.f32 %v406, %v406
        %v408 = vmul.f32 %v407, %v407
        %v410 = vcombine.high %v408, %v408
        %v412 = vmul.f32 %v404, %v408
        %v413 = vmul.f32 %v405, %v410
        %v415 = vcombine.high %v382, %v382
        %v417 = vmul.f32 %v412, %v382
        %v418 = vmul.f32 %v413, %v415
        %v419 = vld [vmem:[%s285] sm:$0x3]
        %v420 = vand.u32 2147483647, %v352
        %v421 = vand.u32 2147483647, %v354
        %v422 = vsub.f32 0.0, %v420
        %v423 = vsub.f32 0.0, %v421
        %v424 = vmul.f32 %v422, 1.442695
        %v425 = vpow.pop %v424
        %v426 = vmul.f32 %v423, 1.442695
        %v427 = vpow.pop %v426
        %v428 = vadd.f32 %v425, 1.0
        %v429 = vadd.f32 %v427, 1.0
        %v430 = vlog2.pop %v428
        %v431 = vmul.f32 %v430, 0.6931472
        %v432 = vlog2.pop %v429
        %v433 = vmul.f32 %v432, 0.6931472
        %v434 = vmin.f32 %v352, 0.0
        %v435 = vmin.f32 %v354, 0.0
        %v436 = vsub.f32 %v434, %v431
        %v437 = vsub.f32 %v435, %v433
        %v438 = vsub.f32 0.0, %v352
        %v439 = vsub.f32 0.0, %v354
        %v440 = vmin.f32 %v438, 0.0
        %v441 = vmin.f32 %v439, 0.0
        %v442 = vsub.f32 %v440, %v431
        %v443 = vsub.f32 %v441, %v433
        %vm444 = vcmp.eq.f32.partialorder %v419, 1.0
        %v445 = vsel %vm444, 1, 0
        %v446 = vcvt.s32.f32 %v445
        %vm447 = vcmp.lt.f32.partialorder %v419, 1.0
        %v448 = vsel %vm447, 1, 0
        %v449 = vcvt.s32.f32 %v448
        %v450 = vsub.f32 1.0, %v370
        %v451 = vsub.f32 1.0, %v372
        %v452 = vmul.f32 %v450, %v450
        %v453 = vmul.f32 %v451, %v451
        %v454 = vmul.f32 %v436, %v452
        %v455 = vmul.f32 %v437, %v453
        %v457 = vlaneseq
        %v458 = vshrl.u32 %v457, 7
        %v459 = vsub.s32 0, %v458
        %v460 = vrot.slane %v446, %v459
        %v461 = vlaneseq
        %v462 = vshrl.u32 %v461, 7
        %v463 = vsub.s32 1, %v462
        %v464 = vrot.slane %v446, %v463
        %v467 = vmul.f32 %v454, %v460
        %v468 = vmul.f32 %v455, %v464
        %v469 = vmul.f32 %v370, %v370
        %v470 = vmul.f32 %v372, %v372
        %v471 = vmul.f32 %v442, %v469
        %v472 = vmul.f32 %v443, %v470
        %v473 = vsub.f32 1.0, %v419
        %v474 = vmul.f32 %v473, %v473
        %v475 = vmul.f32 %v474, %v474
        %v477 = vlaneseq
        %v478 = vshrl.u32 %v477, 7
        %v479 = vsub.s32 0, %v478
        %v480 = vrot.slane %v475, %v479
        %v481 = vlaneseq
        %v482 = vshrl.u32 %v481, 7
        %v483 = vsub.s32 1, %v482
        %v484 = vrot.slane %v475, %v483
        %v487 = vmul.f32 %v471, %v480
        %v488 = vmul.f32 %v472, %v484
        %v490 = vlaneseq
        %v491 = vshrl.u32 %v490, 7
        %v492 = vsub.s32 0, %v491
        %v493 = vrot.slane %v449, %v492
        %v494 = vlaneseq
        %v495 = vshrl.u32 %v494, 7
        %v496 = vsub.s32 1, %v495
        %v497 = vrot.slane %v449, %v496
        %v500 = vmul.f32 %v487, %v493
        %v501 = vmul.f32 %v488, %v497
        %p502 = scmp.eq.s32.totalorder %s22, 0
        // Predicated region
        $region41: #{tpu_custom_call.1} parent=39 // pred_check
          %p503 = pneg %p502
        $region42: #{tpu_custom_call.1} parent=39 // pred_check_branch
          %505 = sbr.rel (%p503) target = $region44
        $region43: #{tpu_custom_call.1} parent=39 // pred_region
          %506 = vst [vmem:[#allocation2] sm:$0x1] 0.0
          %507 = vst [vmem:[#allocation5] sm:$0x1] 0.0
        $region44: #{tpu_custom_call.1} parent=39 // pred_fallthru
          _
        %vm508 = vcmp.eq.s32.totalorder %v288, 0
        %v509 = vsel %vm508, 1, 0
        %v510 = vcvt.s32.f32 %v509
        %vm511 = vcmask 1043456
        %v512 = vsel %vm511, %v396, 0.0
        %v513 = vsel %vm511, %v397, 0.0
        %v514 = vadd.f32 %v512, %v513
        %515 = vadd.xlane.f32.xlu0 %v514
        %v516 = vpop.xlane.xlu0 %515
        %v517 = vrot.slane %v516, 4
        %v518 = vadd.f32 %v516, %v517
        %v519 = vrot.slane %v518, 2
        %v520 = vadd.f32 %v518, %v519
        %v521 = vrot.slane %v520, 1
        %v522 = vadd.f32 %v520, %v521
        %s523 = vtos %v522
        %v524 = vstv %s523
        %v525 = vmul.f32 %v510, %v524
        %vm526 = vcmp.eq.s32.totalorder %v288, 1
        %v527 = vsel %vm526, 1, 0
        %v528 = vcvt.s32.f32 %v527
        %v529 = vsel %vm511, %v417, 0.0
        %v530 = vsel %vm511, %v418, 0.0
        %v531 = vadd.f32 %v529, %v530
        %532 = vadd.xlane.f32.xlu0 %v531
        %v533 = vpop.xlane.xlu0 %532
        %v534 = vrot.slane %v533, 4
        %v535 = vadd.f32 %v533, %v534
        %v536 = vrot.slane %v535, 2
        %v537 = vadd.f32 %v535, %v536
        %v538 = vrot.slane %v537, 1
        %v539 = vadd.f32 %v537, %v538
        %s540 = vtos %v539
        %v541 = vstv %s540
        %v542 = vmul.f32 %v528, %v541
        %v543 = vadd.f32 %v525, %v542
        %vm544 = vcmp.eq.s32.totalorder %v288, 2
        %v545 = vsel %vm544, 1, 0
        %v546 = vcvt.s32.f32 %v545
        %v547 = vsel %vm511, %v379, 0.0
        %v548 = vsel %vm511, %v394, 0.0
        %v549 = vadd.f32 %v547, %v548
        %550 = vadd.xlane.f32.xlu0 %v549
        %v551 = vpop.xlane.xlu0 %550
        %v552 = vrot.slane %v551, 4
        %v553 = vadd.f32 %v551, %v552
        %v554 = vrot.slane %v553, 2
        %v555 = vadd.f32 %v553, %v554
        %v556 = vrot.slane %v555, 1
        %v557 = vadd.f32 %v555, %v556
        %s558 = vtos %v557
        %v559 = vstv %s558
        %v560 = vmul.f32 %v546, %v559
        %v561 = vadd.f32 %v543, %v560
        %vm562 = vcmp.eq.s32.totalorder %v288, 3
        %v563 = vsel %vm562, 1, 0
        %v564 = vcvt.s32.f32 %v563
        %v567 = vrot.slane %v467, 4
        %v568 = vrot.slane %v468, 4
        %vm571 = vcmask 1040384
        %v572 = vsel %vm571, %v567, 0.0
        %v573 = vsel %vm571, %v568, 0.0
        %v574 = vadd.f32 %v572, %v573
        %575 = vadd.xlane.f32.xlu0 %v574
        %v576 = vpop.xlane.xlu0 %575
        %v577 = vrot.slane %v576, 4
        %v578 = vadd.f32 %v576, %v577
        %v579 = vrot.slane %v578, 2
        %v580 = vadd.f32 %v578, %v579
        %v581 = vrot.slane %v580, 1
        %v582 = vadd.f32 %v580, %v581
        %s583 = vtos %v582
        %v584 = vstv %s583
        %v585 = vmul.f32 %v564, %v584
        %v586 = vadd.f32 %v561, %v585
        %vm587 = vcmp.eq.s32.totalorder %v288, 4
        %v588 = vsel %vm587, 1, 0
        %v589 = vcvt.s32.f32 %v588
        %v592 = vrot.slane %v500, 4
        %v593 = vrot.slane %v501, 4
        %v596 = vsel %vm571, %v592, 0.0
        %v597 = vsel %vm571, %v593, 0.0
        %v598 = vadd.f32 %v596, %v597
        %599 = vadd.xlane.f32.xlu0 %v598
        %v600 = vpop.xlane.xlu0 %599
        %v601 = vrot.slane %v600, 4
        %v602 = vadd.f32 %v600, %v601
        %v603 = vrot.slane %v602, 2
        %v604 = vadd.f32 %v602, %v603
        %v605 = vrot.slane %v604, 1
        %v606 = vadd.f32 %v604, %v605
        %s607 = vtos %v606
        %v608 = vstv %s607
        %v609 = vmul.f32 %v589, %v608
        %v610 = vadd.f32 %v586, %v609
        %vm611 = vcmp.eq.s32.totalorder %v288, 5
        %v612 = vsel %vm611, 1, 0
        %v613 = vcvt.s32.f32 %v612
        %v614 = vsel %vm571, %v460, 0.0
        %v615 = vsel %vm571, %v464, 0.0
        %v616 = vadd.f32 %v614, %v615
        %617 = vadd.xlane.f32.xlu0 %v616
        %v618 = vpop.xlane.xlu0 %617
        %v619 = vrot.slane %v618, 4
        %v620 = vadd.f32 %v618, %v619
        %v621 = vrot.slane %v620, 2
        %v622 = vadd.f32 %v620, %v621
        %v623 = vrot.slane %v622, 1
        %v624 = vadd.f32 %v622, %v623
        %s625 = vtos %v624
        %v626 = vstv %s625
        %v627 = vmul.f32 %v613, %v626
        %v628 = vadd.f32 %v610, %v627
        %v629 = vld [vmem:[#allocation2] sm:$0x1]
        %v630 = vadd.f32 %v629, %v628
        %631 = vst [vmem:[#allocation2] sm:$0x1] %v630
        %p632 = scmp.eq.s32.totalorder %s22, 1
        // Predicated region
        $region45: #{tpu_custom_call.1} parent=39 // pred_check
          %p633 = pneg %p632
        $region46: #{tpu_custom_call.1} parent=39 // pred_check_branch
          %635 = sbr.rel (%p633) target = $region48
        $region47: #{tpu_custom_call.1} parent=39 // pred_region
          %v636 = vld [vmem:[#allocation2] sm:$0x1]
          %v637 = vmul.f32 %v636, %v546
          %v638 = vsel %vm571, %v637, 0.0
          %639 = vadd.xlane.f32.xlu0 %v638
          %v640 = vpop.xlane.xlu0 %639
          %v641 = vrot.slane %v640, 4
          %v642 = vadd.f32 %v640, %v641
          %v643 = vrot.slane %v642, 2
          %v644 = vadd.f32 %v642, %v643
          %v645 = vrot.slane %v644, 1
          %v646 = vadd.f32 %v644, %v645
          %s647 = vtos %v646
          %p648 = scmp.eq.f32.partialorder %s647, 0.0
          %v649 = vmul.f32 %v636, %v528
          %v650 = vsel %vm571, %v649, 0.0
          %651 = vadd.xlane.f32.xlu0 %v650
          %v652 = vpop.xlane.xlu0 %651
          %v653 = vrot.slane %v652, 4
          %v654 = vadd.f32 %v652, %v653
          %v655 = vrot.slane %v654, 2
          %v656 = vadd.f32 %v654, %v655
          %v657 = vrot.slane %v656, 1
          %v658 = vadd.f32 %v656, %v657
          %s659 = vtos %v658
          %s660 = ssub.f32 0.0, %s659
          %v661 = vmul.f32 %v636, %v510
          %v662 = vsel %vm571, %v661, 0.0
          %663 = vadd.xlane.f32.xlu0 %v662
          %v664 = vpop.xlane.xlu0 %663
          %v665 = vrot.slane %v664, 4
          %v666 = vadd.f32 %v664, %v665
          %v667 = vrot.slane %v666, 2
          %v668 = vadd.f32 %v666, %v667
          %v669 = vrot.slane %v668, 1
          %v670 = vadd.f32 %v668, %v669
          %s671 = vtos %v670
          %s672 = sadd.f32 %s671, %s659
          %s673 = ssub.f32 0.0, %s672
          %s674 = smax.f32 %s647, 1.0
          %v675 = vstv %s674
          %v676 = vrcp.pop %v675
          %s677 = vtos %v676
          %s678 = smul.f32 %s673, %s677
          %s679 = scalar_select %p648, %s660, %s678
          %v680 = vmul.f32 %v636, %v613
          %v681 = vsel %vm571, %v680, 0.0
          %682 = vadd.xlane.f32.xlu0 %v681
          %v683 = vpop.xlane.xlu0 %682
          %v684 = vrot.slane %v683, 4
          %v685 = vadd.f32 %v683, %v684
          %v686 = vrot.slane %v685, 2
          %v687 = vadd.f32 %v685, %v686
          %v688 = vrot.slane %v687, 1
          %v689 = vadd.f32 %v687, %v688
          %s690 = vtos %v689
          %p691 = scmp.eq.f32.partialorder %s690, 0.0
          %v692 = vmul.f32 %v636, %v589
          %v693 = vsel %vm571, %v692, 0.0
          %694 = vadd.xlane.f32.xlu0 %v693
          %v695 = vpop.xlane.xlu0 %694
          %v696 = vrot.slane %v695, 4
          %v697 = vadd.f32 %v695, %v696
          %v698 = vrot.slane %v697, 2
          %v699 = vadd.f32 %v697, %v698
          %v700 = vrot.slane %v699, 1
          %v701 = vadd.f32 %v699, %v700
          %s702 = vtos %v701
          %s703 = ssub.f32 0.0, %s702
          %v704 = vmul.f32 %v636, %v564
          %v705 = vsel %vm571, %v704, 0.0
          %706 = vadd.xlane.f32.xlu0 %v705
          %v707 = vpop.xlane.xlu0 %706
          %v708 = vrot.slane %v707, 4
          %v709 = vadd.f32 %v707, %v708
          %v710 = vrot.slane %v709, 2
          %v711 = vadd.f32 %v709, %v710
          %v712 = vrot.slane %v711, 1
          %v713 = vadd.f32 %v711, %v712
          %s714 = vtos %v713
          %s715 = sadd.f32 %s714, %s702
          %s716 = ssub.f32 0.0, %s715
          %s717 = smax.f32 %s690, 1.0
          %v718 = vstv %s717
          %v719 = vrcp.pop %v718
          %s720 = vtos %v719
          %s721 = smul.f32 %s716, %s720
          %s722 = scalar_select %p691, %s703, %s721
          %v723 = vstv %s679
          %v724 = vmul.f32 %v510, %v723
          %v725 = vstv %s722
          %v726 = vmul.f32 %v528, %v725
          %v727 = vadd.f32 %v724, %v726
          %728 = vst [vmem:[#allocation5] sm:$0x1] %v727
        $region48: #{tpu_custom_call.1} parent=39 // pred_fallthru
          _
        %s729 = sand.u32 %s150, 1
        %s730 = scalar_lea.sflag [#allocation4], %s729
        %s731 = sand.u32 %s150, 1
        %s732 = smul.addr %s731, 16
        %s733 = scalar_lea.vmem [#allocation3], %s732
        // Predicated region
        $region49: #{tpu_custom_call.1} parent=39 // pred_check
          %p734 = pneg %p160
        $region50: #{tpu_custom_call.1} parent=39 // pred_check_branch
          %736 = sbr.rel (%p734) target = $region52
        $region51: #{tpu_custom_call.1} parent=39 // pred_region
          %s738 = ssub.s32 256, 256
          %739 = vsyncadd %s730, %s738
          %s740 = smul.addr %s22, 2
          %s741 = smul.addr %s740, 128
          %s742 = scalar_lea.hbm %s5, %s741
          %s744 = sshll.u32 %s733, 4
          %s745 = int_to_ptr.vmem [resolvable:$true] %s744
          %747 = dma.vmem_to_hbm [thread:$0]  %s745, 256, %s742, %s730
        $region52: #{tpu_custom_call.1} parent=39 // pred_fallthru
          _
        // Predicated region
        $region53: #{tpu_custom_call.1} parent=39 // pred_check
          %p748 = pneg %p181
        $region54: #{tpu_custom_call.1} parent=39 // pred_check_branch
          %750 = sbr.rel (%p748) target = $region56
        $region55: #{tpu_custom_call.1} parent=39 // pred_region
          %s752 = ssub.s32 16, 16
          %753 = vsyncadd [#allocation6], %s752
          %s755 = sshll.u32 [#allocation5], 4
          %s756 = int_to_ptr.vmem [resolvable:$true] %s755
          %758 = dma.vmem_to_hbm [thread:$0]  %s756, 16, %s6, [#allocation6]
        $region56: #{tpu_custom_call.1} parent=39 // pred_fallthru
          _
        // Predicated region
        $region57: #{tpu_custom_call.1} parent=39 // pred_check
          %p759 = pneg %p181
        $region58: #{tpu_custom_call.1} parent=39 // pred_check_branch
          %761 = sbr.rel (%p759) target = $region60
        $region59: #{tpu_custom_call.1} parent=39 // pred_region
          %762 = dma.done [#allocation6], 16
        $region60: #{tpu_custom_call.1} parent=39 // pred_fallthru
          _
      $region40: #{tpu_custom_call.1} parent=5 // pred_fallthru
        _
      %p763 = scmp.le.s32.totalorder 2, %s17
      // Predicated region
      $region61: #{tpu_custom_call.1} parent=5 // pred_check
        %p764 = pneg %p763
      $region62: #{tpu_custom_call.1} parent=5 // pred_check_branch
        %766 = sbr.rel (%p764) target = $region64
      $region63: #{tpu_custom_call.1} parent=5 // pred_region
        %s767 = ssub.s32 %s17, 2
        // Predicated region
        $region65: #{tpu_custom_call.1} parent=63 // pred_check
          %p768 = pneg %p166
        $region66: #{tpu_custom_call.1} parent=63 // pred_check_branch
          %770 = sbr.rel (%p768) target = $region68
        $region67: #{tpu_custom_call.1} parent=63 // pred_region
          %s771 = sand.u32 %s151, 1
          %s772 = scalar_lea.sflag [#allocation4], %s771
          %s773 = sand.u32 %s151, 1
          %s774 = smul.addr %s773, 16
          %s775 = scalar_lea.vmem [#allocation3], %s774
          %776 = dma.done %s772, 256
        $region68: #{tpu_custom_call.1} parent=63 // pred_fallthru
          _
      $region64: #{tpu_custom_call.1} parent=5 // pred_fallthru
        _
    $region6: #{tpu_custom_call.1} parent=1 // loop_footer
      %s21 = sadd.s32 1, %s17
    $region7: #{tpu_custom_call.1} parent=1 // loop_footer_branch
      %16 = sbr.rel target = $region3
    $region8: #{tpu_custom_call.1} parent=1 // loop_exit
      _
    %777 = vsyncpa [#allocation4], 1
    %s778 = scalar_lea.sflag [#allocation4], 1
    %779 = vsyncpa %s778, 1
    %780 = vsyncpa [#allocation6], 1

</llo_original>
